<compile_context>
chip_gen: v7x
topology: tpu7x:2x2x1
jax: 0.10.0
libtpu: 0.0.40
codegen_flags: <defaults>
</compile_context>

<pallas_src>
import functools

import jax
import jax.numpy as jnp
import numpy as np
from jax import lax
from jax.experimental import pallas as pl
from jax.experimental.pallas import tpu as pltpu


_VMEM_LIMIT_BYTES = 48 * 1024 * 1024   # safe on v5e/v6e (128 MiB) and v7x (64 MiB)
_VMEM_TILE_BUDGET = 40 * 1024 * 1024   # target per-tile working set (headroom for Mosaic)
_MAX_TIME_TILE = 2048                  # diminishing roofline returns beyond this


def _round_up(v, m):
    return ((v + m - 1) // m) * m


# ----------------------------------- kernel ---------------------------------
def _stack_kernel(reset_ref, x_ref, mask_ref, wd_ref, bd_ref, w1_ref, b1_ref,
                  o_ref, *bufs, dilations, tile_t, num_taps, mm_dtype):
    """Fused causal dilated-residual stack for one (batch, time-tile) block.

    reset_ref : (n_tiles,) int32 SMEM   1 where a tile starts a new FPN level
    x_ref     : (1, C, TILE)            activation block (residual source)
    mask_ref  : (1, 1, TILE)            mask block (lane-dense)
    wd_ref    : (L, K, C, C)            dilated conv tap weights (mm_dtype)
    bd_ref    : (L, C, 1)               dilated conv biases (f32)
    w1_ref    : (L, C, C)               1x1 conv weights (mm_dtype)
    b1_ref    : (L, C, 1)               1x1 conv biases (f32)
    o_ref     : (1, C, TILE)            output block
    bufs[l]   : (C, PADL_l + TILE) f32  carry buffer; [PADL_l-H_l : PADL_l)
                                        holds the causal history, [PADL_l :) the
                                        current layer input (PADL_l 128-aligned).
    """
    t_idx = pl.program_id(1)
    TILE = tile_t
    is_start = reset_ref[t_idx] != 0       # new level (or very first tile)
    not_start = reset_ref[t_idx] == 0

    cur = x_ref[0].astype(jnp.float32)     # (C, TILE)
    C = cur.shape[0]
    # Hoist the mask broadcast out of the layer loop (JAX does not CSE it).
    m = jnp.broadcast_to(mask_ref[0].astype(jnp.float32), (C, TILE))

    for l, d in enumerate(dilations):
        H = (num_taps - 1) * d             # causal history length (= 2*d)
        buf = bufs[l]
        PADL = buf.shape[1] - TILE         # 128-aligned start of current region

        # Carry the last H columns of the previous tile's layer input (still in
        # the buffer) into the history region.  MUST precede the store of `cur`.
        @pl.when(not_start)
        def _carry(buf=buf, H=H, PADL=PADL):
            buf[:, pl.ds(PADL - H, H)] = buf[:, pl.ds(PADL + TILE - H, H)]

        # Lane-aligned store of the current layer input.
        buf[:, pl.ds(PADL, TILE)] = cur

        # Level start: replicate padding (PyTorch padding_mode='replicate').
        @pl.when(is_start)
        def _replicate(buf=buf, H=H, PADL=PADL, cur=cur, C=C):
            buf[:, pl.ds(PADL - H, H)] = jnp.broadcast_to(cur[:, 0:1], (C, H))

        # K-tap dilated conv as K accumulating MXU dots (no concat temp).
        # Tap k reads x[t - (K-1-k)*d] straight from the carry buffer.
        h = None
        for k in range(num_taps):
            tap = buf[:, pl.ds(PADL - H + k * d, TILE)].astype(mm_dtype)
            part = jnp.dot(wd_ref[l, k], tap, preferred_element_type=jnp.float32)
            h = part if h is None else h + part
        h = jnp.maximum(h + bd_ref[l], 0.0)                       # bias + ReLU
        z = jnp.dot(w1_ref[l], h.astype(mm_dtype),
                    preferred_element_type=jnp.float32) + b1_ref[l]  # 1x1 conv
        # dropout: eval-mode identity (see TODO in header)
        cur = (cur + z) * m                                       # residual+mask

    o_ref[0] = cur.astype(o_ref.dtype)


# --------------------------------- wrappers ---------------------------------
def _prep_params(layer_params, mm_dtype):
    """Stack per-layer PyTorch-shaped weights into kernel-friendly arrays."""
    wd, bd, w1, b1 = [], [], [], []
    for (w_dil, b_dil, w_1x1, b_1x1) in layer_params:
        # (Cout, Cin, K) -> (K, Cout, Cin): tap k is a contiguous (Cout,Cin) matrix.
        wd.append(jnp.transpose(w_dil, (2, 0, 1)))
        bd.append(b_dil.reshape(-1, 1))
        w1.append(w_1x1[:, :, 0])
        b1.append(b_1x1.reshape(-1, 1))
    return (jnp.stack(wd).astype(mm_dtype),
            jnp.stack(bd).astype(jnp.float32),
            jnp.stack(w1).astype(mm_dtype),
            jnp.stack(b1).astype(jnp.float32))


def _vmem_footprint_bytes(tile, C, L, K, dilations, mm_bytes, io_bytes):
    """Per-tile VMEM working set: carry buffers + double-buffered I/O + weights."""
    lane_c = _round_up(C, 128)
    carry = sum(C * (_round_up((K - 1) * d, 128) + tile) * 4 for d in dilations)
    xo = 2 * 2 * C * tile * io_bytes                  # x + out, double-buffered
    mk = 2 * tile * 4                                 # mask, double-buffered
    w = 2 * (L * K * C * lane_c + L * C * lane_c) * mm_bytes
    b = 2 * 2 * L * C * 128 * 4                       # lane-padded bias tiles
    return carry + xo + mk + w + b


def _select_time_tile(lengths, C, L, K, dilations, mm_bytes, io_bytes, requested):
    """Largest 128-multiple tile that fits the VMEM budget with modest padding."""
    h_max = (K - 1) * max(dilations)
    floor = max(128, _round_up(h_max, 128))           # carry needs TILE >= H_max
    total = sum(lengths)

    def fits(t):
        return _vmem_footprint_bytes(t, C, L, K, dilations, mm_bytes,
                                     io_bytes) <= _VMEM_TILE_BUDGET

    if requested is not None:
        t = max(floor, _round_up(int(requested), 128))
        while t > floor and not fits(t):
            t -= 128
        return t

    cap = max(floor, min(_MAX_TIME_TILE, _round_up(max(lengths), 128)))
    best = floor
    t = floor
    while t <= cap:
        if fits(t):
            padded = sum(_round_up(T, t) for T in lengths)
            if 100 * padded <= 130 * total:           # <= ~30% padding overhead
                best = t
        t += 128
    return best


def causal_dilated_model(fpn_feats, fpn_masks, layer_params, dilations,
                         time_tile=None, mm_dtype=jnp.bfloat16):
    """CausalDilatedModel.forward: full layer stack over every FPN level, fused
    into one pallas_call (levels concatenated along time, causal carry reset at
    level boundaries via a scalar-prefetched per-tile flag)."""
    wd, bd, w1, b1 = _prep_params(layer_params, mm_dtype)
    L, K, C, _ = wd.shape
    N = fpn_feats[0].shape[0]
    lengths = [int(f.shape[2]) for f in fpn_feats]
    io_bytes = fpn_feats[0].dtype.itemsize
    mm_bytes = jnp.dtype(mm_dtype).itemsize

    tile_t = _select_time_tile(lengths, C, L, K, dilations, mm_bytes, io_bytes,
                               time_tile)

    # Zero-pad each level to a tile multiple and concatenate along time.
    padded = [_round_up(T, tile_t) for T in lengths]
    x_cat = jnp.concatenate(
        [jnp.pad(f, ((0, 0), (0, 0), (0, p - T)))
         for f, T, p in zip(fpn_feats, lengths, padded)], axis=2)
    m_cat = jnp.concatenate(
        [jnp.pad(m, ((0, 0), (0, 0), (0, p - T)))
         for m, T, p in zip(fpn_masks, lengths, padded)], axis=2)

    total_t = sum(padded)
    n_tiles = total_t // tile_t

    # Per-tile "level start" flags (scalar-prefetched into SMEM).
    starts = np.zeros((n_tiles,), np.int32)
    offsets = []
    off = 0
    for p in padded:
        offsets.append(off)
        starts[off // tile_t] = 1
        off += p
    reset = jnp.asarray(starts)

    kernel = functools.partial(_stack_kernel, dilations=tuple(dilations),
                               tile_t=tile_t, num_taps=K, mm_dtype=wd.dtype)

    # Per-layer carry buffers: the causal history sits just below a 128-aligned
    # offset so the big per-tile store stays lane-aligned.
    scratch = [
        pltpu.VMEM((C, _round_up((K - 1) * d, 128) + tile_t), jnp.float32)
        for d in dilations
    ]

    grid_spec = pltpu.PrefetchScalarGridSpec(
        num_scalar_prefetch=1,
        grid=(N, n_tiles),
        in_specs=[
            pl.BlockSpec((1, C, tile_t), lambda b, t, rs: (b, 0, t)),      # x
            pl.BlockSpec((1, 1, tile_t), lambda b, t, rs: (b, 0, t)),      # mask
            pl.BlockSpec((L, K, C, C), lambda b, t, rs: (0, 0, 0, 0)),     # wd
            pl.BlockSpec((L, C, 1), lambda b, t, rs: (0, 0, 0)),           # bd
            pl.BlockSpec((L, C, C), lambda b, t, rs: (0, 0, 0)),           # w1
            pl.BlockSpec((L, C, 1), lambda b, t, rs: (0, 0, 0)),           # b1
        ],
        out_specs=pl.BlockSpec((1, C, tile_t), lambda b, t, rs: (b, 0, t)),
        scratch_shapes=scratch,
    )

    out_cat = pl.pallas_call(
        kernel,
        out_shape=jax.ShapeDtypeStruct((N, C, total_t), fpn_feats[0].dtype),
        grid_spec=grid_spec,
        compiler_params=pltpu.CompilerParams(
            # Batch axis shards across TensorCores (v7x megacore); the time axis
            # MUST stay "arbitrary": it carries the causal history in VMEM.
            dimension_semantics=("parallel", "arbitrary"),
            vmem_limit_bytes=_VMEM_LIMIT_BYTES,
        ),
    )(reset, x_cat, m_cat, wd, bd, w1, b1)

    # Slice the concatenated/padded output back into per-level tensors.
    return tuple(out_cat[:, :, o:o + T] for o, T in zip(offsets, lengths))


# ----------------------------- pure-JAX reference ---------------------------
def _reference_layer(x, mask, w_dil, b_dil, w_1x1, b_1x1, dilation):
    d = dilation
    # PyTorch causal branch: pad 2d both sides with 'replicate', conv, trim the
    # last 2d outputs == left-only replicate pad of 2d.
    xp = jnp.pad(x, ((0, 0), (0, 0), (2 * d, 0)), mode="edge")
    out = lax.conv_general_dilated(
        xp, w_dil, window_strides=(1,), padding=[(0, 0)], rhs_dilation=(d,),
        dimension_numbers=("NCH", "OIH", "NCH"))
    out = out + b_dil[None, :, None]
    out = jnp.maximum(out, 0.0)
    out = lax.conv_general_dilated(
        out, w_1x1, window_strides=(1,), padding=[(0, 0)],
        dimension_numbers=("NCH", "OIH", "NCH")) + b_1x1[None, :, None]
    return (x + out) * mask


def _reference_model(fpn_feats, fpn_masks, layer_params, dilations):
    outs = []
    for feat, m in zip(fpn_feats, fpn_masks):
        cur = feat
        for (wd, bdp, w1p, b1p), d in zip(layer_params, dilations):
            cur = _reference_layer(cur, m, wd, bdp, w1p, b1p, d)
        outs.append(cur)
    return tuple(outs)


if __name__ == "__main__":
    # Small shapes consistent with the module (Conv1d stacks on (N, C, T)).
    num_layers = 4
    num_f_maps = 32
    filter_size = 3
    N = 2
    level_lengths = (384, 160)                 # two FPN levels (2nd needs padding)
    dilations = tuple(2 ** i for i in range(num_layers))

    key = jax.random.PRNGKey(0)

    # Deterministic PyTorch-style (uniform +/- 1/sqrt(fan_in)) parameter init.
    layer_params = []
    for _ in range(num_layers):
        key, k_wd, k_bd, k_w1, k_b1 = jax.random.split(key, 5)
        bound_d = 1.0 / np.sqrt(num_f_maps * filter_size)
        w_dil = jax.random.uniform(k_wd, (num_f_maps, num_f_maps, filter_size),
                                   jnp.float32, -bound_d, bound_d)
        b_dil = jax.random.uniform(k_bd, (num_f_maps,), jnp.float32,
                                   -bound_d, bound_d)
        bound_1 = 1.0 / np.sqrt(num_f_maps)
        w_1x1 = jax.random.uniform(k_w1, (num_f_maps, num_f_maps, 1),
                                   jnp.float32, -bound_1, bound_1)
        b_1x1 = jax.random.uniform(k_b1, (num_f_maps,), jnp.float32,
                                   -bound_1, bound_1)
        layer_params.append((w_dil, b_dil, w_1x1, b_1x1))

    fpn_feats, fpn_masks = [], []
    for T in level_lengths:
        key, k_x, k_m = jax.random.split(key, 3)
        fpn_feats.append(jax.random.normal(k_x, (N, num_f_maps, T), jnp.float32))
        fpn_masks.append(
            (jax.random.uniform(k_m, (N, 1, T)) > 0.2).astype(jnp.float32))
    fpn_feats, fpn_masks = tuple(fpn_feats), tuple(fpn_masks)

    # Run 1: automatic VMEM-aware tile selection, bf16 matmul operands (default
    # fast path for v6e/v7x).
    outs_bf16 = causal_dilated_model(fpn_feats, fpn_masks, layer_params, dilations)
    outs_bf16 = jax.block_until_ready(outs_bf16)

    # Run 2: explicit time_tile=256 (exercises the intra-level carry AND a
    # padded level tail) with f32 matmuls for bit-conservative comparison.
    outs_f32 = causal_dilated_model(fpn_feats, fpn_masks, layer_params, dilations,
                                    time_tile=256, mm_dtype=jnp.float32)
    outs_f32 = jax.block_until_ready(outs_f32)

    refs = _reference_model(fpn_feats, fpn_masks, layer_params, dilations)
    for o, r in zip(outs_f32, refs):
        np.testing.assert_allclose(np.asarray(o), np.asarray(r),
                                   rtol=5e-4, atol=5e-4)
    for o, r in zip(outs_bf16, refs):   # bf16 matmul operands -> looser tolerance
        np.testing.assert_allclose(np.asarray(o), np.asarray(r),
                                   rtol=2e-2, atol=2e-2)
    print("KERNEL_OK")
</pallas_src>

<mosaic_0001>
module attributes {stable_mosaic.version = 11 : i64} {
  func.func @_stack_kernel(%arg0: i32, %arg1: i32, %arg2: memref<5xi32, #tpu.memory_space<smem>>, %arg3: memref<1x32x128xf32, #tpu.memory_space<vmem>>, %arg4: memref<1x1x128xf32, #tpu.memory_space<vmem>>, %arg5: memref<4x3x32x32xbf16, #tpu.memory_space<vmem>>, %arg6: memref<4x32x1xf32, #tpu.memory_space<vmem>>, %arg7: memref<4x32x32xbf16, #tpu.memory_space<vmem>>, %arg8: memref<4x32x1xf32, #tpu.memory_space<vmem>>, %arg9: memref<1x32x128xf32, #tpu.memory_space<vmem>>, %arg10: memref<32x256xf32, #tpu.memory_space<vmem>>, %arg11: memref<32x256xf32, #tpu.memory_space<vmem>>, %arg12: memref<32x256xf32, #tpu.memory_space<vmem>>, %arg13: memref<32x256xf32, #tpu.memory_space<vmem>>) attributes {dimension_semantics = [#tpu.dimension_semantics<parallel>, #tpu.dimension_semantics<arbitrary>], iteration_bounds = array<i64: 2, 5>, scalar_prefetch = 1 : i64, scratch_operands = 4 : i64, tpu.core_type = #tpu.core_type<tc>, window_params = [{transform_indices = @transform_0, window_bounds = array<i64: 1, 32, 128>}, {transform_indices = @transform_1, window_bounds = array<i64: 1, 1, 128>}, {pipeline_mode = #tpu.pipeline_mode<synchronous>, transform_indices = @transform_2, window_bounds = array<i64: 4, 3, 32, 32>}, {pipeline_mode = #tpu.pipeline_mode<synchronous>, transform_indices = @transform_3, window_bounds = array<i64: 4, 32, 1>}, {pipeline_mode = #tpu.pipeline_mode<synchronous>, transform_indices = @transform_4, window_bounds = array<i64: 4, 32, 32>}, {pipeline_mode = #tpu.pipeline_mode<synchronous>, transform_indices = @transform_5, window_bounds = array<i64: 4, 32, 1>}, {transform_indices = @transform_6, window_bounds = array<i64: 1, 32, 128>}]} {
    %0 = arith.index_cast %arg1 : i32 to index
    %1 = memref.load %arg2[%0] : memref<5xi32, #tpu.memory_space<smem>>
    %c0_i32 = arith.constant 0 : i32
    %2 = arith.cmpi ne, %1, %c0_i32 : i32
    %3 = arith.index_cast %arg1 : i32 to index
    %4 = memref.load %arg2[%3] : memref<5xi32, #tpu.memory_space<smem>>
    %c0_i32_0 = arith.constant 0 : i32
    %5 = arith.cmpi eq, %4, %c0_i32_0 : i32
    %c0 = arith.constant 0 : index
    %c0_1 = arith.constant 0 : index
    %c0_2 = arith.constant 0 : index
    %6 = vector.load %arg3[%c0, %c0_1, %c0_2] : memref<1x32x128xf32, #tpu.memory_space<vmem>>, vector<1x32x128xf32>
    %7 = vector.shape_cast %6 : vector<1x32x128xf32> to vector<32x128xf32>
    %c0_3 = arith.constant 0 : index
    %c0_4 = arith.constant 0 : index
    %c0_5 = arith.constant 0 : index
    %8 = vector.load %arg4[%c0_3, %c0_4, %c0_5] : memref<1x1x128xf32, #tpu.memory_space<vmem>>, vector<1x1x128xf32>
    %9 = vector.shape_cast %8 : vector<1x1x128xf32> to vector<1x128xf32>
    %10 = vector.shape_cast %9 : vector<1x128xf32> to vector<1x128xf32>
    %11 = vector.broadcast %10 : vector<1x128xf32> to vector<32x128xf32>
    %12 = arith.extui %5 : i1 to i32
    %c0_i32_6 = arith.constant 0 : i32
    %13 = arith.cmpi ne, %12, %c0_i32_6 : i32
    scf.if %13 {
      %c0_143 = arith.constant 0 : index
      %c254 = arith.constant 254 : index
      %167 = vector.load %arg10[%c0_143, %c254] : memref<32x256xf32, #tpu.memory_space<vmem>>, vector<32x2xf32>
      %c0_144 = arith.constant 0 : index
      %c126_145 = arith.constant 126 : index
      %168 = vector.load %arg10[%c0_144, %c126_145] : memref<32x256xf32, #tpu.memory_space<vmem>>, vector<32x2xf32>
      tpu.vector_store %arg10[%c0_144, %c126_145], %167 {strides = array<i32>} : memref<32x256xf32, #tpu.memory_space<vmem>>, vector<32x2xf32>,
    } else {
    }
    %c0_7 = arith.constant 0 : index
    %c128 = arith.constant 128 : index
    %14 = vector.load %arg10[%c0_7, %c128] : memref<32x256xf32, #tpu.memory_space<vmem>>, vector<32x128xf32>
    tpu.vector_store %arg10[%c0_7, %c128], %7 {strides = array<i32>} : memref<32x256xf32, #tpu.memory_space<vmem>>, vector<32x128xf32>,
    %15 = arith.extui %2 : i1 to i32
    %c0_i32_8 = arith.constant 0 : i32
    %16 = arith.cmpi ne, %15, %c0_i32_8 : i32
    scf.if %16 {
      %167 = vector.extract_strided_slice %7 {offsets = [0, 0], sizes = [32, 1], strides = [1, 1]} : vector<32x128xf32> to vector<32x1xf32>
      %168 = vector.shape_cast %167 : vector<32x1xf32> to vector<32x1xf32>
      %169 = vector.broadcast %168 : vector<32x1xf32> to vector<32x2xf32>
      %c0_143 = arith.constant 0 : index
      %c126_144 = arith.constant 126 : index
      %170 = vector.load %arg10[%c0_143, %c126_144] : memref<32x256xf32, #tpu.memory_space<vmem>>, vector<32x2xf32>
      tpu.vector_store %arg10[%c0_143, %c126_144], %169 {strides = array<i32>} : memref<32x256xf32, #tpu.memory_space<vmem>>, vector<32x2xf32>,
    } else {
    }
    %c0_9 = arith.constant 0 : index
    %c126 = arith.constant 126 : index
    %17 = vector.load %arg10[%c0_9, %c126] : memref<32x256xf32, #tpu.memory_space<vmem>>, vector<32x128xf32>
    %18 = arith.truncf %17 : vector<32x128xf32> to vector<32x128xbf16>
    %c0_10 = arith.constant 0 : index
    %c0_11 = arith.constant 0 : index
    %c0_12 = arith.constant 0 : index
    %c0_13 = arith.constant 0 : index
    %19 = vector.load %arg5[%c0_10, %c0_11, %c0_12, %c0_13] : memref<4x3x32x32xbf16, #tpu.memory_space<vmem>>, vector<1x1x32x32xbf16>
    %20 = vector.shape_cast %19 : vector<1x1x32x32xbf16> to vector<32x32xbf16>
    %cst = arith.constant dense<0.000000e+00> : vector<32x128xf32>
    %21 = tpu.matmul %20, %18, %cst {dimension_numbers = #tpu.dot_dimension_numbers<[1], [0], [0], [1], [0, 0, 1, 1], [], []>} : vector<32x32xbf16>, vector<32x128xbf16>, vector<32x128xf32> -> vector<32x128xf32>
    %c0_14 = arith.constant 0 : index
    %c127 = arith.constant 127 : index
    %22 = vector.load %arg10[%c0_14, %c127] : memref<32x256xf32, #tpu.memory_space<vmem>>, vector<32x128xf32>
    %23 = arith.truncf %22 : vector<32x128xf32> to vector<32x128xbf16>
    %c0_15 = arith.constant 0 : index
    %c1 = arith.constant 1 : index
    %c0_16 = arith.constant 0 : index
    %c0_17 = arith.constant 0 : index
    %24 = vector.load %arg5[%c0_15, %c1, %c0_16, %c0_17] : memref<4x3x32x32xbf16, #tpu.memory_space<vmem>>, vector<1x1x32x32xbf16>
    %25 = vector.shape_cast %24 : vector<1x1x32x32xbf16> to vector<32x32xbf16>
    %cst_18 = arith.constant dense<0.000000e+00> : vector<32x128xf32>
    %26 = tpu.matmul %25, %23, %cst_18 {dimension_numbers = #tpu.dot_dimension_numbers<[1], [0], [0], [1], [0, 0, 1, 1], [], []>} : vector<32x32xbf16>, vector<32x128xbf16>, vector<32x128xf32> -> vector<32x128xf32>
    %27 = arith.addf %21, %26 : vector<32x128xf32>
    %c0_19 = arith.constant 0 : index
    %c128_20 = arith.constant 128 : index
    %28 = vector.load %arg10[%c0_19, %c128_20] : memref<32x256xf32, #tpu.memory_space<vmem>>, vector<32x128xf32>
    %29 = arith.truncf %28 : vector<32x128xf32> to vector<32x128xbf16>
    %c0_21 = arith.constant 0 : index
    %c2 = arith.constant 2 : index
    %c0_22 = arith.constant 0 : index
    %c0_23 = arith.constant 0 : index
    %30 = vector.load %arg5[%c0_21, %c2, %c0_22, %c0_23] : memref<4x3x32x32xbf16, #tpu.memory_space<vmem>>, vector<1x1x32x32xbf16>
    %31 = vector.shape_cast %30 : vector<1x1x32x32xbf16> to vector<32x32xbf16>
    %cst_24 = arith.constant dense<0.000000e+00> : vector<32x128xf32>
    %32 = tpu.matmul %31, %29, %cst_24 {dimension_numbers = #tpu.dot_dimension_numbers<[1], [0], [0], [1], [0, 0, 1, 1], [], []>} : vector<32x32xbf16>, vector<32x128xbf16>, vector<32x128xf32> -> vector<32x128xf32>
    %33 = arith.addf %27, %32 : vector<32x128xf32>
    %c0_25 = arith.constant 0 : index
    %c0_26 = arith.constant 0 : index
    %c0_27 = arith.constant 0 : index
    %34 = vector.load %arg6[%c0_25, %c0_26, %c0_27] : memref<4x32x1xf32, #tpu.memory_space<vmem>>, vector<1x32x1xf32>
    %35 = vector.shape_cast %34 : vector<1x32x1xf32> to vector<32x1xf32>
    %36 = vector.broadcast %35 : vector<32x1xf32> to vector<32x128xf32>
    %37 = arith.addf %33, %36 : vector<32x128xf32>
    %cst_28 = arith.constant 0.000000e+00 : f32
    %38 = vector.broadcast %cst_28 : f32 to vector<32x128xf32>
    %39 = arith.maximumf %37, %38 : vector<32x128xf32>
    %c0_29 = arith.constant 0 : index
    %c0_30 = arith.constant 0 : index
    %c0_31 = arith.constant 0 : index
    %40 = vector.load %arg7[%c0_29, %c0_30, %c0_31] : memref<4x32x32xbf16, #tpu.memory_space<vmem>>, vector<1x32x32xbf16>
    %41 = vector.shape_cast %40 : vector<1x32x32xbf16> to vector<32x32xbf16>
    %42 = arith.truncf %39 : vector<32x128xf32> to vector<32x128xbf16>
    %cst_32 = arith.constant dense<0.000000e+00> : vector<32x128xf32>
    %43 = tpu.matmul %41, %42, %cst_32 {dimension_numbers = #tpu.dot_dimension_numbers<[1], [0], [0], [1], [0, 0, 1, 1], [], []>} : vector<32x32xbf16>, vector<32x128xbf16>, vector<32x128xf32> -> vector<32x128xf32>
    %c0_33 = arith.constant 0 : index
    %c0_34 = arith.constant 0 : index
    %c0_35 = arith.constant 0 : index
    %44 = vector.load %arg8[%c0_33, %c0_34, %c0_35] : memref<4x32x1xf32, #tpu.memory_space<vmem>>, vector<1x32x1xf32>
    %45 = vector.shape_cast %44 : vector<1x32x1xf32> to vector<32x1xf32>
    %46 = vector.broadcast %45 : vector<32x1xf32> to vector<32x128xf32>
    %47 = arith.addf %43, %46 : vector<32x128xf32>
    %48 = arith.addf %7, %47 : vector<32x128xf32>
    %49 = arith.mulf %48, %11 : vector<32x128xf32>
    %50 = arith.extui %5 : i1 to i32
    %c0_i32_36 = arith.constant 0 : i32
    %51 = arith.cmpi ne, %50, %c0_i32_36 : i32
    scf.if %51 {
      %c0_143 = arith.constant 0 : index
      %c252 = arith.constant 252 : index
      %167 = vector.load %arg11[%c0_143, %c252] : memref<32x256xf32, #tpu.memory_space<vmem>>, vector<32x4xf32>
      %c0_144 = arith.constant 0 : index
      %c124_145 = arith.constant 124 : index
      %168 = vector.load %arg11[%c0_144, %c124_145] : memref<32x256xf32, #tpu.memory_space<vmem>>, vector<32x4xf32>
      tpu.vector_store %arg11[%c0_144, %c124_145], %167 {strides = array<i32>} : memref<32x256xf32, #tpu.memory_space<vmem>>, vector<32x4xf32>,
    } else {
    }
    %c0_37 = arith.constant 0 : index
    %c128_38 = arith.constant 128 : index
    %52 = vector.load %arg11[%c0_37, %c128_38] : memref<32x256xf32, #tpu.memory_space<vmem>>, vector<32x128xf32>
    tpu.vector_store %arg11[%c0_37, %c128_38], %49 {strides = array<i32>} : memref<32x256xf32, #tpu.memory_space<vmem>>, vector<32x128xf32>,
    %53 = arith.extui %2 : i1 to i32
    %c0_i32_39 = arith.constant 0 : i32
    %54 = arith.cmpi ne, %53, %c0_i32_39 : i32
    scf.if %54 {
      %167 = vector.extract_strided_slice %49 {offsets = [0, 0], sizes = [32, 1], strides = [1, 1]} : vector<32x128xf32> to vector<32x1xf32>
      %168 = vector.shape_cast %167 : vector<32x1xf32> to vector<32x1xf32>
      %169 = vector.broadcast %168 : vector<32x1xf32> to vector<32x4xf32>
      %c0_143 = arith.constant 0 : index
      %c124_144 = arith.constant 124 : index
      %170 = vector.load %arg11[%c0_143, %c124_144] : memref<32x256xf32, #tpu.memory_space<vmem>>, vector<32x4xf32>
      tpu.vector_store %arg11[%c0_143, %c124_144], %169 {strides = array<i32>} : memref<32x256xf32, #tpu.memory_space<vmem>>, vector<32x4xf32>,
    } else {
    }
    %c0_40 = arith.constant 0 : index
    %c124 = arith.constant 124 : index
    %55 = vector.load %arg11[%c0_40, %c124] : memref<32x256xf32, #tpu.memory_space<vmem>>, vector<32x128xf32>
    %56 = arith.truncf %55 : vector<32x128xf32> to vector<32x128xbf16>
    %c1_41 = arith.constant 1 : index
    %c0_42 = arith.constant 0 : index
    %c0_43 = arith.constant 0 : index
    %c0_44 = arith.constant 0 : index
    %57 = vector.load %arg5[%c1_41, %c0_42, %c0_43, %c0_44] : memref<4x3x32x32xbf16, #tpu.memory_space<vmem>>, vector<1x1x32x32xbf16>
    %58 = vector.shape_cast %57 : vector<1x1x32x32xbf16> to vector<32x32xbf16>
    %cst_45 = arith.constant dense<0.000000e+00> : vector<32x128xf32>
    %59 = tpu.matmul %58, %56, %cst_45 {dimension_numbers = #tpu.dot_dimension_numbers<[1], [0], [0], [1], [0, 0, 1, 1], [], []>} : vector<32x32xbf16>, vector<32x128xbf16>, vector<32x128xf32> -> vector<32x128xf32>
    %c0_46 = arith.constant 0 : index
    %c126_47 = arith.constant 126 : index
    %60 = vector.load %arg11[%c0_46, %c126_47] : memref<32x256xf32, #tpu.memory_space<vmem>>, vector<32x128xf32>
    %61 = arith.truncf %60 : vector<32x128xf32> to vector<32x128xbf16>
    %c1_48 = arith.constant 1 : index
    %c1_49 = arith.constant 1 : index
    %c0_50 = arith.constant 0 : index
    %c0_51 = arith.constant 0 : index
    %62 = vector.load %arg5[%c1_48, %c1_49, %c0_50, %c0_51] : memref<4x3x32x32xbf16, #tpu.memory_space<vmem>>, vector<1x1x32x32xbf16>
    %63 = vector.shape_cast %62 : vector<1x1x32x32xbf16> to vector<32x32xbf16>
    %cst_52 = arith.constant dense<0.000000e+00> : vector<32x128xf32>
    %64 = tpu.matmul %63, %61, %cst_52 {dimension_numbers = #tpu.dot_dimension_numbers<[1], [0], [0], [1], [0, 0, 1, 1], [], []>} : vector<32x32xbf16>, vector<32x128xbf16>, vector<32x128xf32> -> vector<32x128xf32>
    %65 = arith.addf %59, %64 : vector<32x128xf32>
    %c0_53 = arith.constant 0 : index
    %c128_54 = arith.constant 128 : index
    %66 = vector.load %arg11[%c0_53, %c128_54] : memref<32x256xf32, #tpu.memory_space<vmem>>, vector<32x128xf32>
    %67 = arith.truncf %66 : vector<32x128xf32> to vector<32x128xbf16>
    %c1_55 = arith.constant 1 : index
    %c2_56 = arith.constant 2 : index
    %c0_57 = arith.constant 0 : index
    %c0_58 = arith.constant 0 : index
    %68 = vector.load %arg5[%c1_55, %c2_56, %c0_57, %c0_58] : memref<4x3x32x32xbf16, #tpu.memory_space<vmem>>, vector<1x1x32x32xbf16>
    %69 = vector.shape_cast %68 : vector<1x1x32x32xbf16> to vector<32x32xbf16>
    %cst_59 = arith.constant dense<0.000000e+00> : vector<32x128xf32>
    %70 = tpu.matmul %69, %67, %cst_59 {dimension_numbers = #tpu.dot_dimension_numbers<[1], [0], [0], [1], [0, 0, 1, 1], [], []>} : vector<32x32xbf16>, vector<32x128xbf16>, vector<32x128xf32> -> vector<32x128xf32>
    %71 = arith.addf %65, %70 : vector<32x128xf32>
    %c1_60 = arith.constant 1 : index
    %c0_61 = arith.constant 0 : index
    %c0_62 = arith.constant 0 : index
    %72 = vector.load %arg6[%c1_60, %c0_61, %c0_62] : memref<4x32x1xf32, #tpu.memory_space<vmem>>, vector<1x32x1xf32>
    %73 = vector.shape_cast %72 : vector<1x32x1xf32> to vector<32x1xf32>
    %74 = vector.broadcast %73 : vector<32x1xf32> to vector<32x128xf32>
    %75 = arith.addf %71, %74 : vector<32x128xf32>
    %cst_63 = arith.constant 0.000000e+00 : f32
    %76 = vector.broadcast %cst_63 : f32 to vector<32x128xf32>
    %77 = arith.maximumf %75, %76 : vector<32x128xf32>
    %c1_64 = arith.constant 1 : index
    %c0_65 = arith.constant 0 : index
    %c0_66 = arith.constant 0 : index
    %78 = vector.load %arg7[%c1_64, %c0_65, %c0_66] : memref<4x32x32xbf16, #tpu.memory_space<vmem>>, vector<1x32x32xbf16>
    %79 = vector.shape_cast %78 : vector<1x32x32xbf16> to vector<32x32xbf16>
    %80 = arith.truncf %77 : vector<32x128xf32> to vector<32x128xbf16>
    %cst_67 = arith.constant dense<0.000000e+00> : vector<32x128xf32>
    %81 = tpu.matmul %79, %80, %cst_67 {dimension_numbers = #tpu.dot_dimension_numbers<[1], [0], [0], [1], [0, 0, 1, 1], [], []>} : vector<32x32xbf16>, vector<32x128xbf16>, vector<32x128xf32> -> vector<32x128xf32>
    %c1_68 = arith.constant 1 : index
    %c0_69 = arith.constant 0 : index
    %c0_70 = arith.constant 0 : index
    %82 = vector.load %arg8[%c1_68, %c0_69, %c0_70] : memref<4x32x1xf32, #tpu.memory_space<vmem>>, vector<1x32x1xf32>
    %83 = vector.shape_cast %82 : vector<1x32x1xf32> to vector<32x1xf32>
    %84 = vector.broadcast %83 : vector<32x1xf32> to vector<32x128xf32>
    %85 = arith.addf %81, %84 : vector<32x128xf32>
    %86 = arith.addf %49, %85 : vector<32x128xf32>
    %87 = arith.mulf %86, %11 : vector<32x128xf32>
    %88 = arith.extui %5 : i1 to i32
    %c0_i32_71 = arith.constant 0 : i32
    %89 = arith.cmpi ne, %88, %c0_i32_71 : i32
    scf.if %89 {
      %c0_143 = arith.constant 0 : index
      %c248 = arith.constant 248 : index
      %167 = vector.load %arg12[%c0_143, %c248] : memref<32x256xf32, #tpu.memory_space<vmem>>, vector<32x8xf32>
      %c0_144 = arith.constant 0 : index
      %c120_145 = arith.constant 120 : index
      %168 = vector.load %arg12[%c0_144, %c120_145] : memref<32x256xf32, #tpu.memory_space<vmem>>, vector<32x8xf32>
      tpu.vector_store %arg12[%c0_144, %c120_145], %167 {strides = array<i32>} : memref<32x256xf32, #tpu.memory_space<vmem>>, vector<32x8xf32>,
    } else {
    }
    %c0_72 = arith.constant 0 : index
    %c128_73 = arith.constant 128 : index
    %90 = vector.load %arg12[%c0_72, %c128_73] : memref<32x256xf32, #tpu.memory_space<vmem>>, vector<32x128xf32>
    tpu.vector_store %arg12[%c0_72, %c128_73], %87 {strides = array<i32>} : memref<32x256xf32, #tpu.memory_space<vmem>>, vector<32x128xf32>,
    %91 = arith.extui %2 : i1 to i32
    %c0_i32_74 = arith.constant 0 : i32
    %92 = arith.cmpi ne, %91, %c0_i32_74 : i32
    scf.if %92 {
      %167 = vector.extract_strided_slice %87 {offsets = [0, 0], sizes = [32, 1], strides = [1, 1]} : vector<32x128xf32> to vector<32x1xf32>
      %168 = vector.shape_cast %167 : vector<32x1xf32> to vector<32x1xf32>
      %169 = vector.broadcast %168 : vector<32x1xf32> to vector<32x8xf32>
      %c0_143 = arith.constant 0 : index
      %c120_144 = arith.constant 120 : index
      %170 = vector.load %arg12[%c0_143, %c120_144] : memref<32x256xf32, #tpu.memory_space<vmem>>, vector<32x8xf32>
      tpu.vector_store %arg12[%c0_143, %c120_144], %169 {strides = array<i32>} : memref<32x256xf32, #tpu.memory_space<vmem>>, vector<32x8xf32>,
    } else {
    }
    %c0_75 = arith.constant 0 : index
    %c120 = arith.constant 120 : index
    %93 = vector.load %arg12[%c0_75, %c120] : memref<32x256xf32, #tpu.memory_space<vmem>>, vector<32x128xf32>
    %94 = arith.truncf %93 : vector<32x128xf32> to vector<32x128xbf16>
    %c2_76 = arith.constant 2 : index
    %c0_77 = arith.constant 0 : index
    %c0_78 = arith.constant 0 : index
    %c0_79 = arith.constant 0 : index
    %95 = vector.load %arg5[%c2_76, %c0_77, %c0_78, %c0_79] : memref<4x3x32x32xbf16, #tpu.memory_space<vmem>>, vector<1x1x32x32xbf16>
    %96 = vector.shape_cast %95 : vector<1x1x32x32xbf16> to vector<32x32xbf16>
    %cst_80 = arith.constant dense<0.000000e+00> : vector<32x128xf32>
    %97 = tpu.matmul %96, %94, %cst_80 {dimension_numbers = #tpu.dot_dimension_numbers<[1], [0], [0], [1], [0, 0, 1, 1], [], []>} : vector<32x32xbf16>, vector<32x128xbf16>, vector<32x128xf32> -> vector<32x128xf32>
    %c0_81 = arith.constant 0 : index
    %c124_82 = arith.constant 124 : index
    %98 = vector.load %arg12[%c0_81, %c124_82] : memref<32x256xf32, #tpu.memory_space<vmem>>, vector<32x128xf32>
    %99 = arith.truncf %98 : vector<32x128xf32> to vector<32x128xbf16>
    %c2_83 = arith.constant 2 : index
    %c1_84 = arith.constant 1 : index
    %c0_85 = arith.constant 0 : index
    %c0_86 = arith.constant 0 : index
    %100 = vector.load %arg5[%c2_83, %c1_84, %c0_85, %c0_86] : memref<4x3x32x32xbf16, #tpu.memory_space<vmem>>, vector<1x1x32x32xbf16>
    %101 = vector.shape_cast %100 : vector<1x1x32x32xbf16> to vector<32x32xbf16>
    %cst_87 = arith.constant dense<0.000000e+00> : vector<32x128xf32>
    %102 = tpu.matmul %101, %99, %cst_87 {dimension_numbers = #tpu.dot_dimension_numbers<[1], [0], [0], [1], [0, 0, 1, 1], [], []>} : vector<32x32xbf16>, vector<32x128xbf16>, vector<32x128xf32> -> vector<32x128xf32>
    %103 = arith.addf %97, %102 : vector<32x128xf32>
    %c0_88 = arith.constant 0 : index
    %c128_89 = arith.constant 128 : index
    %104 = vector.load %arg12[%c0_88, %c128_89] : memref<32x256xf32, #tpu.memory_space<vmem>>, vector<32x128xf32>
    %105 = arith.truncf %104 : vector<32x128xf32> to vector<32x128xbf16>
    %c2_90 = arith.constant 2 : index
    %c2_91 = arith.constant 2 : index
    %c0_92 = arith.constant 0 : index
    %c0_93 = arith.constant 0 : index
    %106 = vector.load %arg5[%c2_90, %c2_91, %c0_92, %c0_93] : memref<4x3x32x32xbf16, #tpu.memory_space<vmem>>, vector<1x1x32x32xbf16>
    %107 = vector.shape_cast %106 : vector<1x1x32x32xbf16> to vector<32x32xbf16>
    %cst_94 = arith.constant dense<0.000000e+00> : vector<32x128xf32>
    %108 = tpu.matmul %107, %105, %cst_94 {dimension_numbers = #tpu.dot_dimension_numbers<[1], [0], [0], [1], [0, 0, 1, 1], [], []>} : vector<32x32xbf16>, vector<32x128xbf16>, vector<32x128xf32> -> vector<32x128xf32>
    %109 = arith.addf %103, %108 : vector<32x128xf32>
    %c2_95 = arith.constant 2 : index
    %c0_96 = arith.constant 0 : index
    %c0_97 = arith.constant 0 : index
    %110 = vector.load %arg6[%c2_95, %c0_96, %c0_97] : memref<4x32x1xf32, #tpu.memory_space<vmem>>, vector<1x32x1xf32>
    %111 = vector.shape_cast %110 : vector<1x32x1xf32> to vector<32x1xf32>
    %112 = vector.broadcast %111 : vector<32x1xf32> to vector<32x128xf32>
    %113 = arith.addf %109, %112 : vector<32x128xf32>
    %cst_98 = arith.constant 0.000000e+00 : f32
    %114 = vector.broadcast %cst_98 : f32 to vector<32x128xf32>
    %115 = arith.maximumf %113, %114 : vector<32x128xf32>
    %c2_99 = arith.constant 2 : index
    %c0_100 = arith.constant 0 : index
    %c0_101 = arith.constant 0 : index
    %116 = vector.load %arg7[%c2_99, %c0_100, %c0_101] : memref<4x32x32xbf16, #tpu.memory_space<vmem>>, vector<1x32x32xbf16>
    %117 = vector.shape_cast %116 : vector<1x32x32xbf16> to vector<32x32xbf16>
    %118 = arith.truncf %115 : vector<32x128xf32> to vector<32x128xbf16>
    %cst_102 = arith.constant dense<0.000000e+00> : vector<32x128xf32>
    %119 = tpu.matmul %117, %118, %cst_102 {dimension_numbers = #tpu.dot_dimension_numbers<[1], [0], [0], [1], [0, 0, 1, 1], [], []>} : vector<32x32xbf16>, vector<32x128xbf16>, vector<32x128xf32> -> vector<32x128xf32>
    %c2_103 = arith.constant 2 : index
    %c0_104 = arith.constant 0 : index
    %c0_105 = arith.constant 0 : index
    %120 = vector.load %arg8[%c2_103, %c0_104, %c0_105] : memref<4x32x1xf32, #tpu.memory_space<vmem>>, vector<1x32x1xf32>
    %121 = vector.shape_cast %120 : vector<1x32x1xf32> to vector<32x1xf32>
    %122 = vector.broadcast %121 : vector<32x1xf32> to vector<32x128xf32>
    %123 = arith.addf %119, %122 : vector<32x128xf32>
    %124 = arith.addf %87, %123 : vector<32x128xf32>
    %125 = arith.mulf %124, %11 : vector<32x128xf32>
    %126 = arith.extui %5 : i1 to i32
    %c0_i32_106 = arith.constant 0 : i32
    %127 = arith.cmpi ne, %126, %c0_i32_106 : i32
    scf.if %127 {
      %c0_143 = arith.constant 0 : index
      %c240 = arith.constant 240 : index
      %167 = vector.load %arg13[%c0_143, %c240] : memref<32x256xf32, #tpu.memory_space<vmem>>, vector<32x16xf32>
      %c0_144 = arith.constant 0 : index
      %c112_145 = arith.constant 112 : index
      %168 = vector.load %arg13[%c0_144, %c112_145] : memref<32x256xf32, #tpu.memory_space<vmem>>, vector<32x16xf32>
      tpu.vector_store %arg13[%c0_144, %c112_145], %167 {strides = array<i32>} : memref<32x256xf32, #tpu.memory_space<vmem>>, vector<32x16xf32>,
    } else {
    }
    %c0_107 = arith.constant 0 : index
    %c128_108 = arith.constant 128 : index
    %128 = vector.load %arg13[%c0_107, %c128_108] : memref<32x256xf32, #tpu.memory_space<vmem>>, vector<32x128xf32>
    tpu.vector_store %arg13[%c0_107, %c128_108], %125 {strides = array<i32>} : memref<32x256xf32, #tpu.memory_space<vmem>>, vector<32x128xf32>,
    %129 = arith.extui %2 : i1 to i32
    %c0_i32_109 = arith.constant 0 : i32
    %130 = arith.cmpi ne, %129, %c0_i32_109 : i32
    scf.if %130 {
      %167 = vector.extract_strided_slice %125 {offsets = [0, 0], sizes = [32, 1], strides = [1, 1]} : vector<32x128xf32> to vector<32x1xf32>
      %168 = vector.shape_cast %167 : vector<32x1xf32> to vector<32x1xf32>
      %169 = vector.broadcast %168 : vector<32x1xf32> to vector<32x16xf32>
      %c0_143 = arith.constant 0 : index
      %c112_144 = arith.constant 112 : index
      %170 = vector.load %arg13[%c0_143, %c112_144] : memref<32x256xf32, #tpu.memory_space<vmem>>, vector<32x16xf32>
      tpu.vector_store %arg13[%c0_143, %c112_144], %169 {strides = array<i32>} : memref<32x256xf32, #tpu.memory_space<vmem>>, vector<32x16xf32>,
    } else {
    }
    %c0_110 = arith.constant 0 : index
    %c112 = arith.constant 112 : index
    %131 = vector.load %arg13[%c0_110, %c112] : memref<32x256xf32, #tpu.memory_space<vmem>>, vector<32x128xf32>
    %132 = arith.truncf %131 : vector<32x128xf32> to vector<32x128xbf16>
    %c3 = arith.constant 3 : index
    %c0_111 = arith.constant 0 : index
    %c0_112 = arith.constant 0 : index
    %c0_113 = arith.constant 0 : index
    %133 = vector.load %arg5[%c3, %c0_111, %c0_112, %c0_113] : memref<4x3x32x32xbf16, #tpu.memory_space<vmem>>, vector<1x1x32x32xbf16>
    %134 = vector.shape_cast %133 : vector<1x1x32x32xbf16> to vector<32x32xbf16>
    %cst_114 = arith.constant dense<0.000000e+00> : vector<32x128xf32>
    %135 = tpu.matmul %134, %132, %cst_114 {dimension_numbers = #tpu.dot_dimension_numbers<[1], [0], [0], [1], [0, 0, 1, 1], [], []>} : vector<32x32xbf16>, vector<32x128xbf16>, vector<32x128xf32> -> vector<32x128xf32>
    %c0_115 = arith.constant 0 : index
    %c120_116 = arith.constant 120 : index
    %136 = vector.load %arg13[%c0_115, %c120_116] : memref<32x256xf32, #tpu.memory_space<vmem>>, vector<32x128xf32>
    %137 = arith.truncf %136 : vector<32x128xf32> to vector<32x128xbf16>
    %c3_117 = arith.constant 3 : index
    %c1_118 = arith.constant 1 : index
    %c0_119 = arith.constant 0 : index
    %c0_120 = arith.constant 0 : index
    %138 = vector.load %arg5[%c3_117, %c1_118, %c0_119, %c0_120] : memref<4x3x32x32xbf16, #tpu.memory_space<vmem>>, vector<1x1x32x32xbf16>
    %139 = vector.shape_cast %138 : vector<1x1x32x32xbf16> to vector<32x32xbf16>
    %cst_121 = arith.constant dense<0.000000e+00> : vector<32x128xf32>
    %140 = tpu.matmul %139, %137, %cst_121 {dimension_numbers = #tpu.dot_dimension_numbers<[1], [0], [0], [1], [0, 0, 1, 1], [], []>} : vector<32x32xbf16>, vector<32x128xbf16>, vector<32x128xf32> -> vector<32x128xf32>
    %141 = arith.addf %135, %140 : vector<32x128xf32>
    %c0_122 = arith.constant 0 : index
    %c128_123 = arith.constant 128 : index
    %142 = vector.load %arg13[%c0_122, %c128_123] : memref<32x256xf32, #tpu.memory_space<vmem>>, vector<32x128xf32>
    %143 = arith.truncf %142 : vector<32x128xf32> to vector<32x128xbf16>
    %c3_124 = arith.constant 3 : index
    %c2_125 = arith.constant 2 : index
    %c0_126 = arith.constant 0 : index
    %c0_127 = arith.constant 0 : index
    %144 = vector.load %arg5[%c3_124, %c2_125, %c0_126, %c0_127] : memref<4x3x32x32xbf16, #tpu.memory_space<vmem>>, vector<1x1x32x32xbf16>
    %145 = vector.shape_cast %144 : vector<1x1x32x32xbf16> to vector<32x32xbf16>
    %cst_128 = arith.constant dense<0.000000e+00> : vector<32x128xf32>
    %146 = tpu.matmul %145, %143, %cst_128 {dimension_numbers = #tpu.dot_dimension_numbers<[1], [0], [0], [1], [0, 0, 1, 1], [], []>} : vector<32x32xbf16>, vector<32x128xbf16>, vector<32x128xf32> -> vector<32x128xf32>
    %147 = arith.addf %141, %146 : vector<32x128xf32>
    %c3_129 = arith.constant 3 : index
    %c0_130 = arith.constant 0 : index
    %c0_131 = arith.constant 0 : index
    %148 = vector.load %arg6[%c3_129, %c0_130, %c0_131] : memref<4x32x1xf32, #tpu.memory_space<vmem>>, vector<1x32x1xf32>
    %149 = vector.shape_cast %148 : vector<1x32x1xf32> to vector<32x1xf32>
    %150 = vector.broadcast %149 : vector<32x1xf32> to vector<32x128xf32>
    %151 = arith.addf %147, %150 : vector<32x128xf32>
    %cst_132 = arith.constant 0.000000e+00 : f32
    %152 = vector.broadcast %cst_132 : f32 to vector<32x128xf32>
    %153 = arith.maximumf %151, %152 : vector<32x128xf32>
    %c3_133 = arith.constant 3 : index
    %c0_134 = arith.constant 0 : index
    %c0_135 = arith.constant 0 : index
    %154 = vector.load %arg7[%c3_133, %c0_134, %c0_135] : memref<4x32x32xbf16, #tpu.memory_space<vmem>>, vector<1x32x32xbf16>
    %155 = vector.shape_cast %154 : vector<1x32x32xbf16> to vector<32x32xbf16>
    %156 = arith.truncf %153 : vector<32x128xf32> to vector<32x128xbf16>
    %cst_136 = arith.constant dense<0.000000e+00> : vector<32x128xf32>
    %157 = tpu.matmul %155, %156, %cst_136 {dimension_numbers = #tpu.dot_dimension_numbers<[1], [0], [0], [1], [0, 0, 1, 1], [], []>} : vector<32x32xbf16>, vector<32x128xbf16>, vector<32x128xf32> -> vector<32x128xf32>
    %c3_137 = arith.constant 3 : index
    %c0_138 = arith.constant 0 : index
    %c0_139 = arith.constant 0 : index
    %158 = vector.load %arg8[%c3_137, %c0_138, %c0_139] : memref<4x32x1xf32, #tpu.memory_space<vmem>>, vector<1x32x1xf32>
    %159 = vector.shape_cast %158 : vector<1x32x1xf32> to vector<32x1xf32>
    %160 = vector.broadcast %159 : vector<32x1xf32> to vector<32x128xf32>
    %161 = arith.addf %157, %160 : vector<32x128xf32>
    %162 = arith.addf %125, %161 : vector<32x128xf32>
    %163 = arith.mulf %162, %11 : vector<32x128xf32>
    %c0_140 = arith.constant 0 : index
    %c0_141 = arith.constant 0 : index
    %c0_142 = arith.constant 0 : index
    %164 = vector.load %arg9[%c0_140, %c0_141, %c0_142] : memref<1x32x128xf32, #tpu.memory_space<vmem>>, vector<1x32x128xf32>
    %165 = vector.shape_cast %164 : vector<1x32x128xf32> to vector<32x128xf32>
    %166 = vector.shape_cast %163 : vector<32x128xf32> to vector<1x32x128xf32>
    tpu.vector_store %arg9[%c0_140, %c0_141, %c0_142], %166 {strides = array<i32>} : memref<1x32x128xf32, #tpu.memory_space<vmem>>, vector<1x32x128xf32>,
    return
  }
  func.func @transform_0(%arg0: i32, %arg1: i32, %arg2: memref<5xi32, #tpu.memory_space<smem>>) -> (i32, i32, i32) {
    %c0_i32 = arith.constant 0 : i32
    %c0_i32_0 = arith.constant 0 : i32
    return %arg0, %c0_i32, %arg1 : i32, i32, i32
  }
  func.func @transform_1(%arg0: i32, %arg1: i32, %arg2: memref<5xi32, #tpu.memory_space<smem>>) -> (i32, i32, i32) {
    %c0_i32 = arith.constant 0 : i32
    %c0_i32_0 = arith.constant 0 : i32
    return %arg0, %c0_i32, %arg1 : i32, i32, i32
  }
  func.func @transform_2(%arg0: i32, %arg1: i32, %arg2: memref<5xi32, #tpu.memory_space<smem>>) -> (i32, i32, i32, i32) {
    %c0_i32 = arith.constant 0 : i32
    %c0_i32_0 = arith.constant 0 : i32
    %c0_i32_1 = arith.constant 0 : i32
    %c0_i32_2 = arith.constant 0 : i32
    %c0_i32_3 = arith.constant 0 : i32
    return %c0_i32, %c0_i32_0, %c0_i32_1, %c0_i32_2 : i32, i32, i32, i32
  }
  func.func @transform_3(%arg0: i32, %arg1: i32, %arg2: memref<5xi32, #tpu.memory_space<smem>>) -> (i32, i32, i32) {
    %c0_i32 = arith.constant 0 : i32
    %c0_i32_0 = arith.constant 0 : i32
    %c0_i32_1 = arith.constant 0 : i32
    %c0_i32_2 = arith.constant 0 : i32
    return %c0_i32, %c0_i32_0, %c0_i32_1 : i32, i32, i32
  }
  func.func @transform_4(%arg0: i32, %arg1: i32, %arg2: memref<5xi32, #tpu.memory_space<smem>>) -> (i32, i32, i32) {
    %c0_i32 = arith.constant 0 : i32
    %c0_i32_0 = arith.constant 0 : i32
    %c0_i32_1 = arith.constant 0 : i32
    %c0_i32_2 = arith.constant 0 : i32
    return %c0_i32, %c0_i32_0, %c0_i32_1 : i32, i32, i32
  }
  func.func @transform_5(%arg0: i32, %arg1: i32, %arg2: memref<5xi32, #tpu.memory_space<smem>>) -> (i32, i32, i32) {
    %c0_i32 = arith.constant 0 : i32
    %c0_i32_0 = arith.constant 0 : i32
    %c0_i32_1 = arith.constant 0 : i32
    %c0_i32_2 = arith.constant 0 : i32
    return %c0_i32, %c0_i32_0, %c0_i32_1 : i32, i32, i32
  }
  func.func @transform_6(%arg0: i32, %arg1: i32, %arg2: memref<5xi32, #tpu.memory_space<smem>>) -> (i32, i32, i32) {
    %c0_i32 = arith.constant 0 : i32
    %c0_i32_0 = arith.constant 0 : i32
    return %arg0, %c0_i32, %arg1 : i32, i32, i32
  }
}

</mosaic_0001>

<llo_original>
// kernel: tpu_custom_call.1
$region0: #{tpu_custom_call.1}
  #allocation0 [shape = 'u32[]', space=smem, size = 0x4, offset = 0x4, fixed_abs, tag = 'smem constant byte address 0x4 - core index']
  #allocation1 [shape = 'u32[144,128]{1,0:T(1,128)}', space=vmem, size = 0x12000, scoped, tag = 'internal scratch']
  #allocation2 [shape = 'f32[32,256]{1,0:T(8,128)}', space=vmem, size = 0x8000, scoped, tag = 'scratch operand']
  #allocation3 [shape = 'f32[32,256]{1,0:T(8,128)}', space=vmem, size = 0x8000, scoped, tag = 'scratch operand']
  #allocation4 [shape = 'f32[32,256]{1,0:T(8,128)}', space=vmem, size = 0x8000, scoped, tag = 'scratch operand']
  #allocation5 [shape = 'f32[32,256]{1,0:T(8,128)}', space=vmem, size = 0x8000, scoped, tag = 'scratch operand']
  #allocation6 [shape = 's32[1]{0}', space=sflag, size = 0x4, scoped, tag = 'scoped memory for tpu_custom_call.1']
  #allocation7 [shape = 'u8[512]{0}', space=smem, size = 0x200, scoped, tag = 'prefetched SMEM operand 0']
  %s0 = inlined_call_operand.vmem [shape: s32[5], index: 0, kind: input, shape index: {}]
  %s1 = inlined_call_operand.hbm [shape: f32[2,32,640], index: 1, kind: input, shape index: {}]
  %s2 = inlined_call_operand.vmem [shape: f32[2,1,640], index: 2, kind: input, shape index: {}]
  %s3 = inlined_call_operand.vmem [shape: bf16[4,3,32,32], index: 3, kind: input, shape index: {}]
  %s4 = inlined_call_operand.vmem [shape: f32[4,32,1], index: 4, kind: input, shape index: {}]
  %s5 = inlined_call_operand.vmem [shape: bf16[4,32,32], index: 5, kind: input, shape index: {}]
  %s6 = inlined_call_operand.vmem [shape: f32[4,32,1], index: 6, kind: input, shape index: {}]
  %s7 = inlined_call_operand.hbm [shape: f32[2,32,640], index: 7, kind: output, shape index: {}]
  %s8 = sld [smem:[#allocation0]]
  $region93: #{tpu_custom_call.1} parent=0
    _
  %s10 = ssub.s32 1, %s8
  %s11 = scalar_select 0, %s10, %s8
  %s12 = sshll.u32 %s0, 4
  %s13 = int_to_ptr.vmem [resolvable:$true] %s12
  %15 = dma.vmem_to_smem %s13, 16, [#allocation7], [#allocation6]
  %16 = dma.done [#allocation6], 16
  %17 = sfence
  $region1: #{tpu_custom_call.1} parent=0
    #allocation8 [shape = 'u8[32768]{0}', space=vmem, size = 0x8000, scoped, tag = 'input window, operand 1']
    #allocation9 [shape = 's32[2]{0}', space=sflag, size = 0x8, scoped, tag = 'scoped memory for tpu_custom_call.1']
    #allocation10 [shape = 's32[2]{0}', space=sflag, size = 0x8, scoped, tag = 'scoped memory for tpu_custom_call.1']
    #allocation11 [shape = 'u8[32768]{0}', space=vmem, size = 0x8000, scoped, tag = 'output window, operand 0']
    %18 = vsyncpa [#allocation9], 0
    %s19 = scalar_lea.sflag [#allocation9], 1
    %20 = vsyncpa %s19, 0
    %21 = vsyncpa [#allocation10], 0
    %s22 = scalar_lea.sflag [#allocation10], 1
    %23 = vsyncpa %s22, 0
    loop: start=0, step=1, limit=12
    $region2: #{tpu_custom_call.1} parent=1 // loop_pre_header
      _
    $region3: #{tpu_custom_call.1} parent=1 // loop_header
      %s25 = sphi 0, %s29
      %p26 = scmp.ge.s32.totalorder %s25, 12
      %s32 = sphi 0, %s44
      %s33 = sphi 0, %s40
      %s34 = sphi 0, %s32
      %s35 = sphi 0, %s33
      %s36 = sphi 0, %s34
      %s37 = sphi 0, %s35
      %s49 = sphi 0, %s51
      %s52 = sphi 0, %s49
      %s53 = sphi 0, %s52
      %s69 = sphi 0, %s53
      %s77 = sphi 0, %s79
      %s80 = sphi 0, %s77
      %s81 = sphi 0, %s80
      %s97 = sphi 0, %s81
      %s101 = sphi 0, %s101
      %s103 = sphi 0, %s101
      %s104 = sphi 0, %s103
      %s118 = sphi 0, %s104
      %s122 = sphi 0, %s122
      %s124 = sphi 0, %s122
      %s125 = sphi 0, %s124
      %s139 = sphi 0, %s125
      %s143 = sphi 0, %s143
      %s145 = sphi 0, %s143
      %s146 = sphi 0, %s145
      %s160 = sphi 0, %s146
      %s164 = sphi 0, %s164
      %s166 = sphi 0, %s164
      %s167 = sphi 0, %s166
      %s181 = sphi 0, %s167
      %s189 = sphi 0, %s191
      %s192 = sphi 0, %s189
      %s193 = sphi 0, %s192
      %s209 = sphi 0, %s193
    $region4: #{tpu_custom_call.1} parent=1 // loop_header_branch
      %28 = sbr.rel (%p26) target = $region8
    $region5: #{tpu_custom_call.1} parent=1 // loop_body
      %s30 = ssub.s32 %s25, 1
      %s31 = ssub.s32 %s25, 2
      %s38 = sadd.s32 1, %s33
      %p39 = scmp.ge.s32.totalorder %s38, 5
      %s40 = scalar_select %p39, 0, %s38
      %s41 = sadd.s32 1, %s32
      %s42 = scalar_select %p39, %s41, %s32
      %p43 = scmp.ge.s32.totalorder %s42, 2
      %s44 = scalar_select %p43, 0, %s42
      %s45 = ssub.s32 %s32, %s44
      %s46 = ssub.s32 %s33, %s40
      %s47 = sor.u32 %s45, %s46
      %p48 = scmp.eq.s32.totalorder %s47, 0
      %s50 = sadd.s32 %s49, 1
      %s51 = scalar_select %p48, %s49, %s50
      %p54 = pneg %p48
      %p55 = scmp.eq.s32.totalorder %s25, 9
      %p56 = por %p54, %p55
      %p57 = scmp.ne.s32.totalorder %s49, %s52
      %p58 = scmp.eq.s32.totalorder %s25, 0
      %p59 = por %p57, %p58
      %p60 = scmp.ne.s32.totalorder %s49, %s52
      %p61 = scmp.eq.s32.totalorder %s30, 9
      %p62 = por %p60, %p61
      %p63 = scmp.ne.s32.totalorder %s52, %s53
      %p64 = scmp.eq.s32.totalorder %s30, 0
      %p65 = por %p63, %p64
      %p66 = scmp.ne.s32.totalorder %s52, %s53
      %p67 = scmp.eq.s32.totalorder %s31, 9
      %p68 = por %p66, %p67
      %p70 = scmp.ne.s32.totalorder %s53, %s69
      %p71 = scmp.eq.s32.totalorder %s31, 0
      %p72 = por %p70, %p71
      %s73 = ssub.s32 %s32, %s44
      %s74 = ssub.s32 %s33, %s40
      %s75 = sor.u32 %s73, %s74
      %p76 = scmp.eq.s32.totalorder %s75, 0
      %s78 = sadd.s32 %s77, 1
      %s79 = scalar_select %p76, %s77, %s78
      %p82 = pneg %p76
      %p83 = scmp.eq.s32.totalorder %s25, 9
      %p84 = por %p82, %p83
      %p85 = scmp.ne.s32.totalorder %s77, %s80
      %p86 = scmp.eq.s32.totalorder %s25, 0
      %p87 = por %p85, %p86
      %p88 = scmp.ne.s32.totalorder %s77, %s80
      %p89 = scmp.eq.s32.totalorder %s30, 9
      %p90 = por %p88, %p89
      %p91 = scmp.ne.s32.totalorder %s80, %s81
      %p92 = scmp.eq.s32.totalorder %s30, 0
      %p93 = por %p91, %p92
      %p94 = scmp.ne.s32.totalorder %s80, %s81
      %p95 = scmp.eq.s32.totalorder %s31, 9
      %p96 = por %p94, %p95
      %p98 = scmp.ne.s32.totalorder %s81, %s97
      %p99 = scmp.eq.s32.totalorder %s31, 0
      %p100 = por %p98, %p99
      %s102 = sadd.s32 %s101, 1
      %p105 = scmp.eq.s32.totalorder %s25, 9
      %p106 = scmp.ne.s32.totalorder %s101, %s103
      %p107 = scmp.eq.s32.totalorder %s25, 0
      %p108 = por %p106, %p107
      %p109 = scmp.ne.s32.totalorder %s101, %s103
      %p110 = scmp.eq.s32.totalorder %s30, 9
      %p111 = por %p109, %p110
      %p112 = scmp.ne.s32.totalorder %s103, %s104
      %p113 = scmp.eq.s32.totalorder %s30, 0
      %p114 = por %p112, %p113
      %p115 = scmp.ne.s32.totalorder %s103, %s104
      %p116 = scmp.eq.s32.totalorder %s31, 9
      %p117 = por %p115, %p116
      %p119 = scmp.ne.s32.totalorder %s104, %s118
      %p120 = scmp.eq.s32.totalorder %s31, 0
      %p121 = por %p119, %p120
      %s123 = sadd.s32 %s122, 1
      %p126 = scmp.eq.s32.totalorder %s25, 9
      %p127 = scmp.ne.s32.totalorder %s122, %s124
      %p128 = scmp.eq.s32.totalorder %s25, 0
      %p129 = por %p127, %p128
      %p130 = scmp.ne.s32.totalorder %s122, %s124
      %p131 = scmp.eq.s32.totalorder %s30, 9
      %p132 = por %p130, %p131
      %p133 = scmp.ne.s32.totalorder %s124, %s125
      %p134 = scmp.eq.s32.totalorder %s30, 0
      %p135 = por %p133, %p134
      %p136 = scmp.ne.s32.totalorder %s124, %s125
      %p137 = scmp.eq.s32.totalorder %s31, 9
      %p138 = por %p136, %p137
      %p140 = scmp.ne.s32.totalorder %s125, %s139
      %p141 = scmp.eq.s32.totalorder %s31, 0
      %p142 = por %p140, %p141
      %s144 = sadd.s32 %s143, 1
      %p147 = scmp.eq.s32.totalorder %s25, 9
      %p148 = scmp.ne.s32.totalorder %s143, %s145
      %p149 = scmp.eq.s32.totalorder %s25, 0
      %p150 = por %p148, %p149
      %p151 = scmp.ne.s32.totalorder %s143, %s145
      %p152 = scmp.eq.s32.totalorder %s30, 9
      %p153 = por %p151, %p152
      %p154 = scmp.ne.s32.totalorder %s145, %s146
      %p155 = scmp.eq.s32.totalorder %s30, 0
      %p156 = por %p154, %p155
      %p157 = scmp.ne.s32.totalorder %s145, %s146
      %p158 = scmp.eq.s32.totalorder %s31, 9
      %p159 = por %p157, %p158
      %p161 = scmp.ne.s32.totalorder %s146, %s160
      %p162 = scmp.eq.s32.totalorder %s31, 0
      %p163 = por %p161, %p162
      %s165 = sadd.s32 %s164, 1
      %p168 = scmp.eq.s32.totalorder %s25, 9
      %p169 = scmp.ne.s32.totalorder %s164, %s166
      %p170 = scmp.eq.s32.totalorder %s25, 0
      %p171 = por %p169, %p170
      %p172 = scmp.ne.s32.totalorder %s164, %s166
      %p173 = scmp.eq.s32.totalorder %s30, 9
      %p174 = por %p172, %p173
      %p175 = scmp.ne.s32.totalorder %s166, %s167
      %p176 = scmp.eq.s32.totalorder %s30, 0
      %p177 = por %p175, %p176
      %p178 = scmp.ne.s32.totalorder %s166, %s167
      %p179 = scmp.eq.s32.totalorder %s31, 9
      %p180 = por %p178, %p179
      %p182 = scmp.ne.s32.totalorder %s167, %s181
      %p183 = scmp.eq.s32.totalorder %s31, 0
      %p184 = por %p182, %p183
      %s185 = ssub.s32 %s32, %s44
      %s186 = ssub.s32 %s33, %s40
      %s187 = sor.u32 %s185, %s186
      %p188 = scmp.eq.s32.totalorder %s187, 0
      %s190 = sadd.s32 %s189, 1
      %s191 = scalar_select %p188, %s189, %s190
      %p194 = pneg %p188
      %p195 = scmp.eq.s32.totalorder %s25, 9
      %p196 = por %p194, %p195
      %p197 = scmp.ne.s32.totalorder %s189, %s192
      %p198 = scmp.eq.s32.totalorder %s25, 0
      %p199 = por %p197, %p198
      %p200 = scmp.ne.s32.totalorder %s189, %s192
      %p201 = scmp.eq.s32.totalorder %s30, 9
      %p202 = por %p200, %p201
      %p203 = scmp.ne.s32.totalorder %s192, %s193
      %p204 = scmp.eq.s32.totalorder %s30, 0
      %p205 = por %p203, %p204
      %p206 = scmp.ne.s32.totalorder %s192, %s193
      %p207 = scmp.eq.s32.totalorder %s31, 9
      %p208 = por %p206, %p207
      %p210 = scmp.ne.s32.totalorder %s193, %s209
      %p211 = scmp.eq.s32.totalorder %s31, 0
      %p212 = por %p210, %p211
      %p213 = scmp.le.s32.totalorder 1, %s25
      %p214 = scmp.lt.s32.totalorder %s25, 11
      %p215 = pnand %p213, %p214
      %p216 = pneg %p215
      // Predicated region
      $region9: #{tpu_custom_call.1} parent=5 // pred_check
        _
      $region10: #{tpu_custom_call.1} parent=5 // pred_check_branch
        %218 = sbr.rel (%p215) target = $region12
      $region11: #{tpu_custom_call.1} parent=5 // pred_region
        %s219 = ssub.s32 %s25, 1
        // Predicated region
        $region13: #{tpu_custom_call.1} parent=11 // pred_check
          %p220 = pneg %p114
        $region14: #{tpu_custom_call.1} parent=11 // pred_check_branch
          %222 = sbr.rel (%p220) target = $region16
        $region15: #{tpu_custom_call.1} parent=11 // pred_region
          _
        $region16: #{tpu_custom_call.1} parent=11 // pred_fallthru
          _
        // Predicated region
        $region17: #{tpu_custom_call.1} parent=11 // pred_check
          %p223 = pneg %p135
        $region18: #{tpu_custom_call.1} parent=11 // pred_check_branch
          %225 = sbr.rel (%p223) target = $region20
        $region19: #{tpu_custom_call.1} parent=11 // pred_region
          _
        $region20: #{tpu_custom_call.1} parent=11 // pred_fallthru
          _
        // Predicated region
        $region21: #{tpu_custom_call.1} parent=11 // pred_check
          %p226 = pneg %p156
        $region22: #{tpu_custom_call.1} parent=11 // pred_check_branch
          %228 = sbr.rel (%p226) target = $region24
        $region23: #{tpu_custom_call.1} parent=11 // pred_region
          _
        $region24: #{tpu_custom_call.1} parent=11 // pred_fallthru
          _
        // Predicated region
        $region25: #{tpu_custom_call.1} parent=11 // pred_check
          %p229 = pneg %p177
        $region26: #{tpu_custom_call.1} parent=11 // pred_check_branch
          %231 = sbr.rel (%p229) target = $region28
        $region27: #{tpu_custom_call.1} parent=11 // pred_region
          _
        $region28: #{tpu_custom_call.1} parent=11 // pred_fallthru
          _
      $region12: #{tpu_custom_call.1} parent=5 // pred_fallthru
        _
      %p232 = scmp.lt.s32.totalorder %s25, 10
      // Predicated region
      $region29: #{tpu_custom_call.1} parent=5 // pred_check
        %p233 = pneg %p232
      $region30: #{tpu_custom_call.1} parent=5 // pred_check_branch
        %235 = sbr.rel (%p233) target = $region32
      $region31: #{tpu_custom_call.1} parent=5 // pred_region
        // Predicated region
        $region33: #{tpu_custom_call.1} parent=31 // pred_check
          %p236 = pneg %p59
        $region34: #{tpu_custom_call.1} parent=31 // pred_check_branch
          %238 = sbr.rel (%p236) target = $region36
        $region35: #{tpu_custom_call.1} parent=31 // pred_region
          %s239 = sand.u32 %s49, 1
          %s240 = scalar_lea.sflag [#allocation9], %s239
          %s241 = sand.u32 %s49, 1
          %s242 = smul.addr %s241, 32
          %s243 = scalar_lea.vmem [#allocation8], %s242
          %s245 = ssub.s32 512, 512
          %246 = vsyncadd %s240, %s245
          %s247 = smul.addr %s32, 20
          %s248 = sadd.s32 %s33, %s247
          %s249 = smul.addr %s248, 128
          %s250 = scalar_lea.hbm %s1, %s249
          %s251 = sshll.u32 %s243, 4
          %s252 = int_to_ptr.vmem [resolvable:$true] %s251
          %257 = dma.hbm_to_vmem [thread:$0]  %s250, 512, %s252, %s240, 640, 128, 8
        $region36: #{tpu_custom_call.1} parent=31 // pred_fallthru
          _
        // Predicated region
        $region37: #{tpu_custom_call.1} parent=31 // pred_check
          %p258 = pneg %p87
        $region38: #{tpu_custom_call.1} parent=31 // pred_check_branch
          %260 = sbr.rel (%p258) target = $region40
        $region39: #{tpu_custom_call.1} parent=31 // pred_region
          %p261 = scmp.lt.s32.totalorder %s32, 1
          %s262 = scalar_select %p261, %s32, 1
          %p263 = scmp.lt.s32.totalorder %s33, 4
          %s264 = scalar_select %p263, %s33, 4
          %s265 = smul.addr %s262, 5
          %s266 = sadd.s32 %s264, %s265
          %s267 = scalar_lea.vmem %s2, %s266
        $region40: #{tpu_custom_call.1} parent=31 // pred_fallthru
          _
      $region32: #{tpu_custom_call.1} parent=5 // pred_fallthru
        _
      %p268 = scmp.le.s32.totalorder 1, %s25
      %p269 = scmp.lt.s32.totalorder %s25, 11
      %p270 = pnand %p268, %p269
      %p271 = pneg %p270
      // Predicated region
      $region41: #{tpu_custom_call.1} parent=5 // pred_check
        _
      $region42: #{tpu_custom_call.1} parent=5 // pred_check_branch
        %273 = sbr.rel (%p270) target = $region44
      $region43: #{tpu_custom_call.1} parent=5 // pred_region
        %s274 = ssub.s32 %s25, 1
        %s275 = sand.u32 %s52, 1
        %s276 = scalar_lea.sflag [#allocation9], %s275
        %s277 = sand.u32 %s52, 1
        %s278 = smul.addr %s277, 32
        %s279 = scalar_lea.vmem [#allocation8], %s278
        // Predicated region
        $region45: #{tpu_custom_call.1} parent=43 // pred_check
          %p280 = pneg %p65
        $region46: #{tpu_custom_call.1} parent=43 // pred_check_branch
          %282 = sbr.rel (%p280) target = $region48
        $region47: #{tpu_custom_call.1} parent=43 // pred_region
          %283 = dma.done %s276, 512
        $region48: #{tpu_custom_call.1} parent=43 // pred_fallthru
          _
        %s284 = sand.u32 %s52, 1
        %s285 = scalar_lea.sflag [#allocation9], %s284
        %s286 = sand.u32 %s52, 1
        %s287 = smul.addr %s286, 32
        %s288 = scalar_lea.vmem [#allocation8], %s287
        %p289 = pneg %p65
        %p290 = pneg %p62
        %p291 = scmp.lt.s32.totalorder %s34, 1
        %s292 = scalar_select %p291, %s34, 1
        %p293 = scmp.lt.s32.totalorder %s35, 4
        %s294 = scalar_select %p293, %s35, 4
        %s295 = smul.addr %s292, 5
        %s296 = sadd.s32 %s294, %s295
        %s297 = scalar_lea.vmem %s2, %s296
        %p298 = pneg %p93
        %p299 = pneg %p90
        %p300 = pneg %p114
        %p301 = pneg %p111
        %p302 = pneg %p135
        %p303 = pneg %p132
        %p304 = pneg %p156
        %p305 = pneg %p153
        %p306 = pneg %p177
        %p307 = pneg %p174
        %p308 = pneg %p205
        %p309 = pneg %p202
        %s310 = sand.u32 %s192, 1
        %s311 = scalar_lea.sflag [#allocation10], %s310
        %s312 = sand.u32 %s192, 1
        %s313 = smul.addr %s312, 32
        %s314 = scalar_lea.vmem [#allocation11], %s313
        %p315 = scmp.lt.s32.totalorder %s34, 1
        %s316 = scalar_select %p315, %s34, 1
        %p317 = scmp.lt.s32.totalorder %s35, 4
        %s318 = scalar_select %p317, %s35, 4
        %s319 = smul.addr %s316, 5
        %s320 = sadd.s32 %s318, %s319
        %s321 = scalar_lea.vmem %s2, %s320
        %s323 = sld [smem:[#allocation7 + %s35]]
        %p324 = scmp.ne.s32.totalorder %s323, 0
        %p325 = scmp.eq.s32.totalorder %s323, 0
        %v326 = vld [vmem:[%s279] sm:$0xff]
        %v327 = vld [vmem:[%s279 + $0x8] sm:$0xff]
        %v328 = vld [vmem:[%s279 + $0x10] sm:$0xff]
        %v329 = vld [vmem:[%s279 + $0x18] sm:$0xff]
        %v330 = vld [vmem:[%s321] sm:$0x1]
        %v332 = vlaneseq
        %v333 = vshrl.u32 %v332, 7
        %v334 = vsub.s32 0, %v333
        %v335 = vrot.slane %v330, %v334
        // Predicated region
        $region49: #{tpu_custom_call.1} parent=43 // pred_check
          %p337 = pneg %p325
        $region50: #{tpu_custom_call.1} parent=43 // pred_check_branch
          %339 = sbr.rel (%p337) target = $region52
        $region51: #{tpu_custom_call.1} parent=43 // pred_region
          %v340 = vld [vmem:[#allocation2 + $0x8] sm:$0xff]
          %v341 = vld [vmem:[#allocation2 + $0x18] sm:$0xff]
          %v342 = vld [vmem:[#allocation2 + $0x28] sm:$0xff]
          %v343 = vld [vmem:[#allocation2 + $0x38] sm:$0xff]
          %vm344 = vcmask 1048560
          %345 = vst.msk [vmem:[#allocation2] sm:$0xff] %vm344, %v340
          %346 = vst.msk [vmem:[#allocation2 + $0x10] sm:$0xff] %vm344, %v341
          %347 = vst.msk [vmem:[#allocation2 + $0x20] sm:$0xff] %vm344, %v342
          %348 = vst.msk [vmem:[#allocation2 + $0x30] sm:$0xff] %vm344, %v343
        $region52: #{tpu_custom_call.1} parent=43 // pred_fallthru
          _
        %349 = vst [vmem:[#allocation2 + $0x8] sm:$0xff] %v326
        %350 = vst [vmem:[#allocation2 + $0x18] sm:$0xff] %v327
        %351 = vst [vmem:[#allocation2 + $0x28] sm:$0xff] %v328
        %352 = vst [vmem:[#allocation2 + $0x38] sm:$0xff] %v329
        // Predicated region
        $region53: #{tpu_custom_call.1} parent=43 // pred_check
          %p353 = pneg %p324
        $region54: #{tpu_custom_call.1} parent=43 // pred_check_branch
          %355 = sbr.rel (%p353) target = $region56
        $region55: #{tpu_custom_call.1} parent=43 // pred_region
          %357 = vset.pattern.permute.xlu0 0
          %358 = vperm.xlu0 %357, %v326
          %v359 = vpop.permute.xlu0 %358
          %362 = vset.pattern.permute.xlu0 0
          %363 = vperm.xlu0 %362, %v327
          %v364 = vpop.permute.xlu0 %363
          %367 = vset.pattern.permute.xlu0 0
          %368 = vperm.xlu0 %367, %v328
          %v369 = vpop.permute.xlu0 %368
          %372 = vset.pattern.permute.xlu0 0
          %373 = vperm.xlu0 %372, %v329
          %v374 = vpop.permute.xlu0 %373
          %vm376 = vcmask 1048560
          %377 = vst.msk [vmem:[#allocation2] sm:$0xff] %vm376, %v359
          %378 = vst.msk [vmem:[#allocation2 + $0x10] sm:$0xff] %vm376, %v364
          %379 = vst.msk [vmem:[#allocation2 + $0x20] sm:$0xff] %vm376, %v369
          %380 = vst.msk [vmem:[#allocation2 + $0x30] sm:$0xff] %vm376, %v374
        $region56: #{tpu_custom_call.1} parent=43 // pred_fallthru
          _
        %v381 = vld [vmem:[#allocation2] sm:$0xff]
        %v382 = vld [vmem:[#allocation2 + $0x8] sm:$0xff]
        %v383 = vld [vmem:[#allocation2 + $0x10] sm:$0xff]
        %v384 = vld [vmem:[#allocation2 + $0x18] sm:$0xff]
        %v385 = vld [vmem:[#allocation2 + $0x20] sm:$0xff]
        %v386 = vld [vmem:[#allocation2 + $0x28] sm:$0xff]
        %v387 = vld [vmem:[#allocation2 + $0x30] sm:$0xff]
        %v388 = vld [vmem:[#allocation2 + $0x38] sm:$0xff]
        %v389 = vpack.c.bf16 %v383, %v381
        %v390 = vpack.c.bf16 %v384, %v382
        %v391 = vpack.c.bf16 %v387, %v385
        %v392 = vpack.c.bf16 %v388, %v386
        %v393 = vld [vmem:[%s3] sm:$0xf]
        %v394 = vld [vmem:[%s3 + $0x4] sm:$0xf]
        %v395 = vld [vmem:[%s3 + $0x8] sm:$0xf]
        %v396 = vld [vmem:[%s3 + $0xc] sm:$0xf]
        %s397 = scalar_lea.vmem %s3, 16
        %v398 = vld [vmem:[%s397] sm:$0xf]
        %v399 = vld [vmem:[%s397 + $0x4] sm:$0xf]
        %v400 = vld [vmem:[%s397 + $0x8] sm:$0xf]
        %v401 = vld [vmem:[%s397 + $0xc] sm:$0xf]
        %v406 = vunpack.c.l.b16 %v398
        %v407 = vunpack.c.l.b16 %v399
        %v408 = vunpack.c.l.b16 %v400
        %v409 = vunpack.c.l.b16 %v401
        %v410 = vpack.c.b16 %v407, %v406
        %v411 = vpack.c.b16 %v409, %v408
        %416 = vrot.lane.b32.xlu0 %v389, 1
        %v417 = vpop.permute.xlu0 %416
        %418 = vrot.lane.b32.xlu0 %v390, 1
        %v419 = vpop.permute.xlu0 %418
        %420 = vrot.lane.b32.xlu0 %v391, 1
        %v421 = vpop.permute.xlu0 %420
        %422 = vrot.lane.b32.xlu0 %v392, 1
        %v423 = vpop.permute.xlu0 %422
        %vm424 = vcmask 7168
        %v425 = vsel %vm424, %v417, %v419
        %v426 = vsel %vm424, %v421, %v423
        %vm429 = vcmask 261120
        %v431 = vsel %vm429, %v410, 0
        %v434 = vsel %vm429, %v411, 0
        %436 = vmatprep.subr.bf16.mxu0 0
        %437 = vmatpush1.bf16.msra.mxu0 %v425
        %438 = vmatprep.subr.bf16.mxu0 0
        %439 = vmatpush1.bf16.msra.mxu0 %v426
        %440 = vmatprep.subr.bf16.mxu0 0
        %441 = vmatpush1.bf16.msra.mxu0 0
        %442 = vmatprep.subr.bf16.mxu0 0
        %443 = vmatpush1.bf16.msra.mxu0 0
        %444 = vmatprep.subr.bf16.mxu0 0
        %445 = vmatpush1.bf16.msra.mxu0 0
        %446 = vmatprep.subr.bf16.mxu0 0
        %447 = vmatpush1.bf16.msra.mxu0 0
        %448 = vmatprep.subr.bf16.mxu0 0
        %449 = vmatpush1.bf16.msra.mxu0 0
        %450 = vmatprep.subr.bf16.mxu0 0
        %451 = vmatpush1.bf16.msra.mxu0 0
        %452 = vmatprep.subr.bf16.mxu0 0
        %453 = vmatpush1.bf16.msra.mxu0 0
        %454 = vmatprep.subr.bf16.mxu0 0
        %455 = vmatpush1.bf16.msra.mxu0 0
        %456 = vmatprep.subr.bf16.mxu0 0
        %457 = vmatpush1.bf16.msra.mxu0 0
        %458 = vmatprep.subr.bf16.mxu0 0
        %459 = vmatpush1.bf16.msra.mxu0 0
        %460 = vmatprep.subr.bf16.mxu0 0
        %461 = vmatpush1.bf16.msra.mxu0 0
        %462 = vmatprep.subr.bf16.mxu0 0
        %463 = vmatpush1.bf16.msra.mxu0 0
        %464 = vmatprep.subr.bf16.mxu0 0
        %465 = vmatpush1.bf16.msra.mxu0 0
        %466 = vmatprep.subr.bf16.mxu0 0
        %467 = vmatpush1.bf16.msra.mxu0 0
        %468 = vmatprep.mubr.bf16.mxu0 0
        %469 = vmatmul.mubr.bf16.gmra.mrb[0].mxu0 %v431
        %v470 = vpop.f32.mrb[0].mxu0
        %v471 = vadd.f32 0.0, %v470
        %v472 = vpop.f32.mrb[0].mxu0
        %v473 = vpop.f32.mrb[0].mxu0
        %v474 = vadd.f32 0.0, %v473
        %v475 = vpop.f32.mrb[0].mxu0
        %476 = vmatprep.mubr.bf16.mxu0 0
        %477 = vmatmul.mubr.bf16.gmra.mrb[0].mxu0 %v434
        %v478 = vpop.f32.mrb[0].mxu0
        %v479 = vadd.f32 0.0, %v478
        %v480 = vpop.f32.mrb[0].mxu0
        %v481 = vpop.f32.mrb[0].mxu0
        %v482 = vadd.f32 0.0, %v481
        %v483 = vpop.f32.mrb[0].mxu0
        %484 = vdwg.mxu0
        %v489 = vunpack.c.l.b16 %v393
        %v490 = vunpack.c.l.b16 %v394
        %v491 = vunpack.c.l.b16 %v395
        %v492 = vunpack.c.l.b16 %v396
        %v493 = vpack.c.b16 %v490, %v489
        %v494 = vpack.c.b16 %v492, %v491
        %495 = vrot.lane.b32.xlu0 %v389, 2
        %v496 = vpop.permute.xlu0 %495
        %497 = vrot.lane.b32.xlu0 %v390, 2
        %v498 = vpop.permute.xlu0 %497
        %499 = vrot.lane.b32.xlu0 %v391, 2
        %v500 = vpop.permute.xlu0 %499
        %501 = vrot.lane.b32.xlu0 %v392, 2
        %v502 = vpop.permute.xlu0 %501
        %vm503 = vcmask 15360
        %v504 = vsel %vm503, %v496, %v498
        %v505 = vsel %vm503, %v500, %v502
        %v509 = vsel %vm429, %v493, 0
        %v512 = vsel %vm429, %v494, 0
        %514 = vmatprep.subr.bf16.mxu0 0
        %515 = vmatpush1.bf16.msra.mxu0 %v504
        %516 = vmatprep.subr.bf16.mxu0 0
        %517 = vmatpush1.bf16.msra.mxu0 %v505
        %518 = vmatprep.subr.bf16.mxu0 0
        %519 = vmatpush1.bf16.msra.mxu0 0
        %520 = vmatprep.subr.bf16.mxu0 0
        %521 = vmatpush1.bf16.msra.mxu0 0
        %522 = vmatprep.subr.bf16.mxu0 0
        %523 = vmatpush1.bf16.msra.mxu0 0
        %524 = vmatprep.subr.bf16.mxu0 0
        %525 = vmatpush1.bf16.msra.mxu0 0
        %526 = vmatprep.subr.bf16.mxu0 0
        %527 = vmatpush1.bf16.msra.mxu0 0
        %528 = vmatprep.subr.bf16.mxu0 0
        %529 = vmatpush1.bf16.msra.mxu0 0
        %530 = vmatprep.subr.bf16.mxu0 0
        %531 = vmatpush1.bf16.msra.mxu0 0
        %532 = vmatprep.subr.bf16.mxu0 0
        %533 = vmatpush1.bf16.msra.mxu0 0
        %534 = vmatprep.subr.bf16.mxu0 0
        %535 = vmatpush1.bf16.msra.mxu0 0
        %536 = vmatprep.subr.bf16.mxu0 0
        %537 = vmatpush1.bf16.msra.mxu0 0
        %538 = vmatprep.subr.bf16.mxu0 0
        %539 = vmatpush1.bf16.msra.mxu0 0
        %540 = vmatprep.subr.bf16.mxu0 0
        %541 = vmatpush1.bf16.msra.mxu0 0
        %542 = vmatprep.subr.bf16.mxu0 0
        %543 = vmatpush1.bf16.msra.mxu0 0
        %544 = vmatprep.subr.bf16.mxu0 0
        %545 = vmatpush1.bf16.msra.mxu0 0
        %546 = vmatprep.mubr.bf16.mxu0 0
        %547 = vmatmul.mubr.bf16.gmra.mrb[0].mxu0 %v509
        %v548 = vpop.f32.mrb[0].mxu0
        %v549 = vadd.f32 %v471, %v548
        %v550 = vpop.f32.mrb[0].mxu0
        %v551 = vpop.f32.mrb[0].mxu0
        %v552 = vadd.f32 %v474, %v551
        %v553 = vpop.f32.mrb[0].mxu0
        %554 = vmatprep.mubr.bf16.mxu0 0
        %555 = vmatmul.mubr.bf16.gmra.mrb[0].mxu0 %v512
        %v556 = vpop.f32.mrb[0].mxu0
        %v557 = vadd.f32 %v479, %v556
        %v558 = vpop.f32.mrb[0].mxu0
        %v559 = vpop.f32.mrb[0].mxu0
        %v560 = vadd.f32 %v482, %v559
        %v561 = vpop.f32.mrb[0].mxu0
        %562 = vdwg.mxu0
        %s563 = scalar_lea.vmem %s3, 32
        %v564 = vld [vmem:[%s563] sm:$0xf]
        %v565 = vld [vmem:[%s563 + $0x4] sm:$0xf]
        %v566 = vld [vmem:[%s563 + $0x8] sm:$0xf]
        %v567 = vld [vmem:[%s563 + $0xc] sm:$0xf]
        %v572 = vunpack.c.l.b16 %v564
        %v573 = vunpack.c.l.b16 %v565
        %v574 = vunpack.c.l.b16 %v566
        %v575 = vunpack.c.l.b16 %v567
        %v576 = vpack.c.b16 %v573, %v572
        %v577 = vpack.c.b16 %v575, %v574
        %v579 = vsel %vm429, %v576, 0
        %v582 = vsel %vm429, %v577, 0
        %584 = vmatprep.subr.bf16.mxu0 0
        %585 = vmatpush1.bf16.msra.mxu0 %v390
        %586 = vmatprep.subr.bf16.mxu0 0
        %587 = vmatpush1.bf16.msra.mxu0 %v392
        %588 = vmatprep.subr.bf16.mxu0 0
        %589 = vmatpush1.bf16.msra.mxu0 0
        %590 = vmatprep.subr.bf16.mxu0 0
        %591 = vmatpush1.bf16.msra.mxu0 0
        %592 = vmatprep.subr.bf16.mxu0 0
        %593 = vmatpush1.bf16.msra.mxu0 0
        %594 = vmatprep.subr.bf16.mxu0 0
        %595 = vmatpush1.bf16.msra.mxu0 0
        %596 = vmatprep.subr.bf16.mxu0 0
        %597 = vmatpush1.bf16.msra.mxu0 0
        %598 = vmatprep.subr.bf16.mxu0 0
        %599 = vmatpush1.bf16.msra.mxu0 0
        %600 = vmatprep.subr.bf16.mxu0 0
        %601 = vmatpush1.bf16.msra.mxu0 0
        %602 = vmatprep.subr.bf16.mxu0 0
        %603 = vmatpush1.bf16.msra.mxu0 0
        %604 = vmatprep.subr.bf16.mxu0 0
        %605 = vmatpush1.bf16.msra.mxu0 0
        %606 = vmatprep.subr.bf16.mxu0 0
        %607 = vmatpush1.bf16.msra.mxu0 0
        %608 = vmatprep.subr.bf16.mxu0 0
        %609 = vmatpush1.bf16.msra.mxu0 0
        %610 = vmatprep.subr.bf16.mxu0 0
        %611 = vmatpush1.bf16.msra.mxu0 0
        %612 = vmatprep.subr.bf16.mxu0 0
        %613 = vmatpush1.bf16.msra.mxu0 0
        %614 = vmatprep.subr.bf16.mxu0 0
        %615 = vmatpush1.bf16.msra.mxu0 0
        %616 = vmatprep.mubr.bf16.mxu0 0
        %617 = vmatmul.mubr.bf16.gmra.mrb[0].mxu0 %v579
        %v618 = vpop.f32.mrb[0].mxu0
        %v619 = vadd.f32 0.0, %v618
        %v620 = vpop.f32.mrb[0].mxu0
        %v621 = vpop.f32.mrb[0].mxu0
        %v622 = vadd.f32 0.0, %v621
        %v623 = vpop.f32.mrb[0].mxu0
        %624 = vmatprep.mubr.bf16.mxu0 0
        %625 = vmatmul.mubr.bf16.gmra.mrb[0].mxu0 %v582
        %v626 = vpop.f32.mrb[0].mxu0
        %v627 = vadd.f32 0.0, %v626
        %v628 = vpop.f32.mrb[0].mxu0
        %v629 = vpop.f32.mrb[0].mxu0
        %v630 = vadd.f32 0.0, %v629
        %v631 = vpop.f32.mrb[0].mxu0
        %632 = vdwg.mxu0
        %v633 = vadd.f32 %v549, %v619
        %v634 = vadd.f32 %v552, %v622
        %v635 = vadd.f32 %v557, %v627
        %v636 = vadd.f32 %v560, %v630
        %v637 = vld [vmem:[%s4] sm:$0xff]
        %v638 = vld [vmem:[%s4 + $0x8] sm:$0xff]
        %v639 = vld [vmem:[%s4 + $0x10] sm:$0xff]
        %v640 = vld [vmem:[%s4 + $0x18] sm:$0xff]
        %642 = vset.pattern.permute.xlu0 0
        %643 = vperm.xlu0 %642, %v637
        %v644 = vpop.permute.xlu0 %643
        %647 = vset.pattern.permute.xlu0 0
        %648 = vperm.xlu0 %647, %v638
        %v649 = vpop.permute.xlu0 %648
        %652 = vset.pattern.permute.xlu0 0
        %653 = vperm.xlu0 %652, %v639
        %v654 = vpop.permute.xlu0 %653
        %657 = vset.pattern.permute.xlu0 0
        %658 = vperm.xlu0 %657, %v640
        %v659 = vpop.permute.xlu0 %658
        %v661 = vadd.f32 %v633, %v644
        %v662 = vadd.f32 %v634, %v649
        %v663 = vadd.f32 %v635, %v654
        %v664 = vadd.f32 %v636, %v659
        %v665 = vmax.f32 %v661, 0.0
        %v666 = vmax.f32 %v662, 0.0
        %v667 = vmax.f32 %v663, 0.0
        %v668 = vmax.f32 %v664, 0.0
        %v669 = vld [vmem:[%s5] sm:$0xf]
        %v670 = vld [vmem:[%s5 + $0x4] sm:$0xf]
        %v671 = vld [vmem:[%s5 + $0x8] sm:$0xf]
        %v672 = vld [vmem:[%s5 + $0xc] sm:$0xf]
        %v673 = vpack.c.bf16 %v666, %v665
        %v674 = vpack.c.bf16 %v668, %v667
        %v675 = vld [vmem:[%s6] sm:$0xff]
        %v676 = vld [vmem:[%s6 + $0x8] sm:$0xff]
        %v677 = vld [vmem:[%s6 + $0x10] sm:$0xff]
        %v678 = vld [vmem:[%s6 + $0x18] sm:$0xff]
        %680 = vset.pattern.permute.xlu0 0
        %681 = vperm.xlu0 %680, %v675
        %v682 = vpop.permute.xlu0 %681
        %685 = vset.pattern.permute.xlu0 0
        %686 = vperm.xlu0 %685, %v676
        %v687 = vpop.permute.xlu0 %686
        %690 = vset.pattern.permute.xlu0 0
        %691 = vperm.xlu0 %690, %v677
        %v692 = vpop.permute.xlu0 %691
        %695 = vset.pattern.permute.xlu0 0
        %696 = vperm.xlu0 %695, %v678
        %v697 = vpop.permute.xlu0 %696
        %v703 = vunpack.c.l.b16 %v669
        %v704 = vunpack.c.l.b16 %v670
        %v705 = vunpack.c.l.b16 %v671
        %v706 = vunpack.c.l.b16 %v672
        %v707 = vpack.c.b16 %v704, %v703
        %v708 = vpack.c.b16 %v706, %v705
        %v710 = vsel %vm429, %v707, 0
        %v713 = vsel %vm429, %v708, 0
        %715 = vmatprep.subr.bf16.mxu0 0
        %716 = vmatpush1.bf16.msra.mxu0 %v673
        %717 = vmatprep.subr.bf16.mxu0 0
        %718 = vmatpush1.bf16.msra.mxu0 %v674
        %719 = vmatprep.subr.bf16.mxu0 0
        %720 = vmatpush1.bf16.msra.mxu0 0
        %721 = vmatprep.subr.bf16.mxu0 0
        %722 = vmatpush1.bf16.msra.mxu0 0
        %723 = vmatprep.subr.bf16.mxu0 0
        %724 = vmatpush1.bf16.msra.mxu0 0
        %725 = vmatprep.subr.bf16.mxu0 0
        %726 = vmatpush1.bf16.msra.mxu0 0
        %727 = vmatprep.subr.bf16.mxu0 0
        %728 = vmatpush1.bf16.msra.mxu0 0
        %729 = vmatprep.subr.bf16.mxu0 0
        %730 = vmatpush1.bf16.msra.mxu0 0
        %731 = vmatprep.subr.bf16.mxu0 0
        %732 = vmatpush1.bf16.msra.mxu0 0
        %733 = vmatprep.subr.bf16.mxu0 0
        %734 = vmatpush1.bf16.msra.mxu0 0
        %735 = vmatprep.subr.bf16.mxu0 0
        %736 = vmatpush1.bf16.msra.mxu0 0
        %737 = vmatprep.subr.bf16.mxu0 0
        %738 = vmatpush1.bf16.msra.mxu0 0
        %739 = vmatprep.subr.bf16.mxu0 0
        %740 = vmatpush1.bf16.msra.mxu0 0
        %741 = vmatprep.subr.bf16.mxu0 0
        %742 = vmatpush1.bf16.msra.mxu0 0
        %743 = vmatprep.subr.bf16.mxu0 0
        %744 = vmatpush1.bf16.msra.mxu0 0
        %745 = vmatprep.subr.bf16.mxu0 0
        %746 = vmatpush1.bf16.msra.mxu0 0
        %747 = vmatprep.mubr.bf16.mxu0 0
        %748 = vmatmul.mubr.bf16.gmra.mrb[0].mxu0 %v710
        %v749 = vpop.f32.mrb[0].mxu0
        %v750 = vadd.f32 %v682, %v749
        %v751 = vpop.f32.mrb[0].mxu0
        %v752 = vpop.f32.mrb[0].mxu0
        %v753 = vadd.f32 %v687, %v752
        %v754 = vpop.f32.mrb[0].mxu0
        %755 = vmatprep.mubr.bf16.mxu0 0
        %756 = vmatmul.mubr.bf16.gmra.mrb[0].mxu0 %v713
        %v757 = vpop.f32.mrb[0].mxu0
        %v758 = vadd.f32 %v692, %v757
        %v759 = vpop.f32.mrb[0].mxu0
        %v760 = vpop.f32.mrb[0].mxu0
        %v761 = vadd.f32 %v697, %v760
        %v762 = vpop.f32.mrb[0].mxu0
        %763 = vdwg.mxu0
        %v764 = vadd.f32 %v326, %v750
        %v765 = vadd.f32 %v327, %v753
        %v766 = vadd.f32 %v328, %v758
        %v767 = vadd.f32 %v329, %v761
        %v768 = vmul.f32 %v764, %v335
        %v769 = vmul.f32 %v765, %v335
        %v770 = vmul.f32 %v766, %v335
        %v771 = vmul.f32 %v767, %v335
        // Predicated region
        $region57: #{tpu_custom_call.1} parent=43 // pred_check
          %p772 = pneg %p325
        $region58: #{tpu_custom_call.1} parent=43 // pred_check_branch
          %774 = sbr.rel (%p772) target = $region60
        $region59: #{tpu_custom_call.1} parent=43 // pred_region
          %v775 = vld [vmem:[#allocation3 + $0x8] sm:$0xff]
          %v776 = vld [vmem:[#allocation3 + $0x18] sm:$0xff]
          %v777 = vld [vmem:[#allocation3 + $0x28] sm:$0xff]
          %v778 = vld [vmem:[#allocation3 + $0x38] sm:$0xff]
          %vm779 = vcmask 1048544
          %780 = vst.msk [vmem:[#allocation3] sm:$0xff] %vm779, %v775
          %781 = vst.msk [vmem:[#allocation3 + $0x10] sm:$0xff] %vm779, %v776
          %782 = vst.msk [vmem:[#allocation3 + $0x20] sm:$0xff] %vm779, %v777
          %783 = vst.msk [vmem:[#allocation3 + $0x30] sm:$0xff] %vm779, %v778
        $region60: #{tpu_custom_call.1} parent=43 // pred_fallthru
          _
        %784 = vst [vmem:[#allocation3 + $0x8] sm:$0xff] %v768
        %785 = vst [vmem:[#allocation3 + $0x18] sm:$0xff] %v769
        %786 = vst [vmem:[#allocation3 + $0x28] sm:$0xff] %v770
        %787 = vst [vmem:[#allocation3 + $0x38] sm:$0xff] %v771
        // Predicated region
        $region61: #{tpu_custom_call.1} parent=43 // pred_check
          %p788 = pneg %p324
        $region62: #{tpu_custom_call.1} parent=43 // pred_check_branch
          %790 = sbr.rel (%p788) target = $region64
        $region63: #{tpu_custom_call.1} parent=43 // pred_region
          %792 = vset.pattern.permute.xlu0 0
          %793 = vperm.xlu0 %792, %v768
          %v794 = vpop.permute.xlu0 %793
          %797 = vset.pattern.permute.xlu0 0
          %798 = vperm.xlu0 %797, %v769
          %v799 = vpop.permute.xlu0 %798
          %802 = vset.pattern.permute.xlu0 0
          %803 = vperm.xlu0 %802, %v770
          %v804 = vpop.permute.xlu0 %803
          %807 = vset.pattern.permute.xlu0 0
          %808 = vperm.xlu0 %807, %v771
          %v809 = vpop.permute.xlu0 %808
          %vm811 = vcmask 1048544
          %812 = vst.msk [vmem:[#allocation3] sm:$0xff] %vm811, %v794
          %813 = vst.msk [vmem:[#allocation3 + $0x10] sm:$0xff] %vm811, %v799
          %814 = vst.msk [vmem:[#allocation3 + $0x20] sm:$0xff] %vm811, %v804
          %815 = vst.msk [vmem:[#allocation3 + $0x30] sm:$0xff] %vm811, %v809
        $region64: #{tpu_custom_call.1} parent=43 // pred_fallthru
          _
        %v816 = vld [vmem:[#allocation3] sm:$0xff]
        %v817 = vld [vmem:[#allocation3 + $0x8] sm:$0xff]
        %v818 = vld [vmem:[#allocation3 + $0x10] sm:$0xff]
        %v819 = vld [vmem:[#allocation3 + $0x18] sm:$0xff]
        %v820 = vld [vmem:[#allocation3 + $0x20] sm:$0xff]
        %v821 = vld [vmem:[#allocation3 + $0x28] sm:$0xff]
        %v822 = vld [vmem:[#allocation3 + $0x30] sm:$0xff]
        %v823 = vld [vmem:[#allocation3 + $0x38] sm:$0xff]
        %v824 = vpack.c.bf16 %v818, %v816
        %v825 = vpack.c.bf16 %v819, %v817
        %v826 = vpack.c.bf16 %v822, %v820
        %v827 = vpack.c.bf16 %v823, %v821
        %s828 = scalar_lea.vmem %s3, 48
        %v829 = vld [vmem:[%s828] sm:$0xf]
        %v830 = vld [vmem:[%s828 + $0x4] sm:$0xf]
        %v831 = vld [vmem:[%s828 + $0x8] sm:$0xf]
        %v832 = vld [vmem:[%s828 + $0xc] sm:$0xf]
        %s833 = scalar_lea.vmem %s3, 64
        %v834 = vld [vmem:[%s833] sm:$0xf]
        %v835 = vld [vmem:[%s833 + $0x4] sm:$0xf]
        %v836 = vld [vmem:[%s833 + $0x8] sm:$0xf]
        %v837 = vld [vmem:[%s833 + $0xc] sm:$0xf]
        %v842 = vunpack.c.l.b16 %v834
        %v843 = vunpack.c.l.b16 %v835
        %v844 = vunpack.c.l.b16 %v836
        %v845 = vunpack.c.l.b16 %v837
        %v846 = vpack.c.b16 %v843, %v842
        %v847 = vpack.c.b16 %v845, %v844
        %852 = vrot.lane.b32.xlu0 %v824, 2
        %v853 = vpop.permute.xlu0 %852
        %854 = vrot.lane.b32.xlu0 %v825, 2
        %v855 = vpop.permute.xlu0 %854
        %856 = vrot.lane.b32.xlu0 %v826, 2
        %v857 = vpop.permute.xlu0 %856
        %858 = vrot.lane.b32.xlu0 %v827, 2
        %v859 = vpop.permute.xlu0 %858
        %v860 = vsel %vm503, %v853, %v855
        %v861 = vsel %vm503, %v857, %v859
        %v865 = vsel %vm429, %v846, 0
        %v868 = vsel %vm429, %v847, 0
        %870 = vmatprep.subr.bf16.mxu0 0
        %871 = vmatpush1.bf16.msra.mxu0 %v860
        %872 = vmatprep.subr.bf16.mxu0 0
        %873 = vmatpush1.bf16.msra.mxu0 %v861
        %874 = vmatprep.subr.bf16.mxu0 0
        %875 = vmatpush1.bf16.msra.mxu0 0
        %876 = vmatprep.subr.bf16.mxu0 0
        %877 = vmatpush1.bf16.msra.mxu0 0
        %878 = vmatprep.subr.bf16.mxu0 0
        %879 = vmatpush1.bf16.msra.mxu0 0
        %880 = vmatprep.subr.bf16.mxu0 0
        %881 = vmatpush1.bf16.msra.mxu0 0
        %882 = vmatprep.subr.bf16.mxu0 0
        %883 = vmatpush1.bf16.msra.mxu0 0
        %884 = vmatprep.subr.bf16.mxu0 0
        %885 = vmatpush1.bf16.msra.mxu0 0
        %886 = vmatprep.subr.bf16.mxu0 0
        %887 = vmatpush1.bf16.msra.mxu0 0
        %888 = vmatprep.subr.bf16.mxu0 0
        %889 = vmatpush1.bf16.msra.mxu0 0
        %890 = vmatprep.subr.bf16.mxu0 0
        %891 = vmatpush1.bf16.msra.mxu0 0
        %892 = vmatprep.subr.bf16.mxu0 0
        %893 = vmatpush1.bf16.msra.mxu0 0
        %894 = vmatprep.subr.bf16.mxu0 0
        %895 = vmatpush1.bf16.msra.mxu0 0
        %896 = vmatprep.subr.bf16.mxu0 0
        %897 = vmatpush1.bf16.msra.mxu0 0
        %898 = vmatprep.subr.bf16.mxu0 0
        %899 = vmatpush1.bf16.msra.mxu0 0
        %900 = vmatprep.subr.bf16.mxu0 0
        %901 = vmatpush1.bf16.msra.mxu0 0
        %902 = vmatprep.mubr.bf16.mxu0 0
        %903 = vmatmul.mubr.bf16.gmra.mrb[0].mxu0 %v865
        %v904 = vpop.f32.mrb[0].mxu0
        %v905 = vadd.f32 0.0, %v904
        %v906 = vpop.f32.mrb[0].mxu0
        %v907 = vpop.f32.mrb[0].mxu0
        %v908 = vadd.f32 0.0, %v907
        %v909 = vpop.f32.mrb[0].mxu0
        %910 = vmatprep.mubr.bf16.mxu0 0
        %911 = vmatmul.mubr.bf16.gmra.mrb[0].mxu0 %v868
        %v912 = vpop.f32.mrb[0].mxu0
        %v913 = vadd.f32 0.0, %v912
        %v914 = vpop.f32.mrb[0].mxu0
        %v915 = vpop.f32.mrb[0].mxu0
        %v916 = vadd.f32 0.0, %v915
        %v917 = vpop.f32.mrb[0].mxu0
        %918 = vdwg.mxu0
        %v923 = vunpack.c.l.b16 %v829
        %v924 = vunpack.c.l.b16 %v830
        %v925 = vunpack.c.l.b16 %v831
        %v926 = vunpack.c.l.b16 %v832
        %v927 = vpack.c.b16 %v924, %v923
        %v928 = vpack.c.b16 %v926, %v925
        %929 = vrot.lane.b32.xlu0 %v824, 4
        %v930 = vpop.permute.xlu0 %929
        %931 = vrot.lane.b32.xlu0 %v825, 4
        %v932 = vpop.permute.xlu0 %931
        %933 = vrot.lane.b32.xlu0 %v826, 4
        %v934 = vpop.permute.xlu0 %933
        %935 = vrot.lane.b32.xlu0 %v827, 4
        %v936 = vpop.permute.xlu0 %935
        %vm937 = vcmask 31744
        %v938 = vsel %vm937, %v930, %v932
        %v939 = vsel %vm937, %v934, %v936
        %v943 = vsel %vm429, %v927, 0
        %v946 = vsel %vm429, %v928, 0
        %948 = vmatprep.subr.bf16.mxu0 0
        %949 = vmatpush1.bf16.msra.mxu0 %v938
        %950 = vmatprep.subr.bf16.mxu0 0
        %951 = vmatpush1.bf16.msra.mxu0 %v939
        %952 = vmatprep.subr.bf16.mxu0 0
        %953 = vmatpush1.bf16.msra.mxu0 0
        %954 = vmatprep.subr.bf16.mxu0 0
        %955 = vmatpush1.bf16.msra.mxu0 0
        %956 = vmatprep.subr.bf16.mxu0 0
        %957 = vmatpush1.bf16.msra.mxu0 0
        %958 = vmatprep.subr.bf16.mxu0 0
        %959 = vmatpush1.bf16.msra.mxu0 0
        %960 = vmatprep.subr.bf16.mxu0 0
        %961 = vmatpush1.bf16.msra.mxu0 0
        %962 = vmatprep.subr.bf16.mxu0 0
        %963 = vmatpush1.bf16.msra.mxu0 0
        %964 = vmatprep.subr.bf16.mxu0 0
        %965 = vmatpush1.bf16.msra.mxu0 0
        %966 = vmatprep.subr.bf16.mxu0 0
        %967 = vmatpush1.bf16.msra.mxu0 0
        %968 = vmatprep.subr.bf16.mxu0 0
        %969 = vmatpush1.bf16.msra.mxu0 0
        %970 = vmatprep.subr.bf16.mxu0 0
        %971 = vmatpush1.bf16.msra.mxu0 0
        %972 = vmatprep.subr.bf16.mxu0 0
        %973 = vmatpush1.bf16.msra.mxu0 0
        %974 = vmatprep.subr.bf16.mxu0 0
        %975 = vmatpush1.bf16.msra.mxu0 0
        %976 = vmatprep.subr.bf16.mxu0 0
        %977 = vmatpush1.bf16.msra.mxu0 0
        %978 = vmatprep.subr.bf16.mxu0 0
        %979 = vmatpush1.bf16.msra.mxu0 0
        %980 = vmatprep.mubr.bf16.mxu0 0
        %981 = vmatmul.mubr.bf16.gmra.mrb[0].mxu0 %v943
        %v982 = vpop.f32.mrb[0].mxu0
        %v983 = vadd.f32 %v905, %v982
        %v984 = vpop.f32.mrb[0].mxu0
        %v985 = vpop.f32.mrb[0].mxu0
        %v986 = vadd.f32 %v908, %v985
        %v987 = vpop.f32.mrb[0].mxu0
        %988 = vmatprep.mubr.bf16.mxu0 0
        %989 = vmatmul.mubr.bf16.gmra.mrb[0].mxu0 %v946
        %v990 = vpop.f32.mrb[0].mxu0
        %v991 = vadd.f32 %v913, %v990
        %v992 = vpop.f32.mrb[0].mxu0
        %v993 = vpop.f32.mrb[0].mxu0
        %v994 = vadd.f32 %v916, %v993
        %v995 = vpop.f32.mrb[0].mxu0
        %996 = vdwg.mxu0
        %s997 = scalar_lea.vmem %s3, 80
        %v998 = vld [vmem:[%s997] sm:$0xf]
        %v999 = vld [vmem:[%s997 + $0x4] sm:$0xf]
        %v1000 = vld [vmem:[%s997 + $0x8] sm:$0xf]
        %v1001 = vld [vmem:[%s997 + $0xc] sm:$0xf]
        %v1006 = vunpack.c.l.b16 %v998
        %v1007 = vunpack.c.l.b16 %v999
        %v1008 = vunpack.c.l.b16 %v1000
        %v1009 = vunpack.c.l.b16 %v1001
        %v1010 = vpack.c.b16 %v1007, %v1006
        %v1011 = vpack.c.b16 %v1009, %v1008
        %v1013 = vsel %vm429, %v1010, 0
        %v1016 = vsel %vm429, %v1011, 0
        %1018 = vmatprep.subr.bf16.mxu0 0
        %1019 = vmatpush1.bf16.msra.mxu0 %v825
        %1020 = vmatprep.subr.bf16.mxu0 0
        %1021 = vmatpush1.bf16.msra.mxu0 %v827
        %1022 = vmatprep.subr.bf16.mxu0 0
        %1023 = vmatpush1.bf16.msra.mxu0 0
        %1024 = vmatprep.subr.bf16.mxu0 0
        %1025 = vmatpush1.bf16.msra.mxu0 0
        %1026 = vmatprep.subr.bf16.mxu0 0
        %1027 = vmatpush1.bf16.msra.mxu0 0
        %1028 = vmatprep.subr.bf16.mxu0 0
        %1029 = vmatpush1.bf16.msra.mxu0 0
        %1030 = vmatprep.subr.bf16.mxu0 0
        %1031 = vmatpush1.bf16.msra.mxu0 0
        %1032 = vmatprep.subr.bf16.mxu0 0
        %1033 = vmatpush1.bf16.msra.mxu0 0
        %1034 = vmatprep.subr.bf16.mxu0 0
        %1035 = vmatpush1.bf16.msra.mxu0 0
        %1036 = vmatprep.subr.bf16.mxu0 0
        %1037 = vmatpush1.bf16.msra.mxu0 0
        %1038 = vmatprep.subr.bf16.mxu0 0
        %1039 = vmatpush1.bf16.msra.mxu0 0
        %1040 = vmatprep.subr.bf16.mxu0 0
        %1041 = vmatpush1.bf16.msra.mxu0 0
        %1042 = vmatprep.subr.bf16.mxu0 0
        %1043 = vmatpush1.bf16.msra.mxu0 0
        %1044 = vmatprep.subr.bf16.mxu0 0
        %1045 = vmatpush1.bf16.msra.mxu0 0
        %1046 = vmatprep.subr.bf16.mxu0 0
        %1047 = vmatpush1.bf16.msra.mxu0 0
        %1048 = vmatprep.subr.bf16.mxu0 0
        %1049 = vmatpush1.bf16.msra.mxu0 0
        %1050 = vmatprep.mubr.bf16.mxu0 0
        %1051 = vmatmul.mubr.bf16.gmra.mrb[0].mxu0 %v1013
        %v1052 = vpop.f32.mrb[0].mxu0
        %v1053 = vadd.f32 0.0, %v1052
        %v1054 = vpop.f32.mrb[0].mxu0
        %v1055 = vpop.f32.mrb[0].mxu0
        %v1056 = vadd.f32 0.0, %v1055
        %v1057 = vpop.f32.mrb[0].mxu0
        %1058 = vmatprep.mubr.bf16.mxu0 0
        %1059 = vmatmul.mubr.bf16.gmra.mrb[0].mxu0 %v1016
        %v1060 = vpop.f32.mrb[0].mxu0
        %v1061 = vadd.f32 0.0, %v1060
        %v1062 = vpop.f32.mrb[0].mxu0
        %v1063 = vpop.f32.mrb[0].mxu0
        %v1064 = vadd.f32 0.0, %v1063
        %v1065 = vpop.f32.mrb[0].mxu0
        %1066 = vdwg.mxu0
        %v1067 = vadd.f32 %v983, %v1053
        %v1068 = vadd.f32 %v986, %v1056
        %v1069 = vadd.f32 %v991, %v1061
        %v1070 = vadd.f32 %v994, %v1064
        %s1071 = scalar_lea.vmem %s4, 32
        %v1072 = vld [vmem:[%s1071] sm:$0xff]
        %v1073 = vld [vmem:[%s1071 + $0x8] sm:$0xff]
        %v1074 = vld [vmem:[%s1071 + $0x10] sm:$0xff]
        %v1075 = vld [vmem:[%s1071 + $0x18] sm:$0xff]
        %1077 = vset.pattern.permute.xlu0 0
        %1078 = vperm.xlu0 %1077, %v1072
        %v1079 = vpop.permute.xlu0 %1078
        %1082 = vset.pattern.permute.xlu0 0
        %1083 = vperm.xlu0 %1082, %v1073
        %v1084 = vpop.permute.xlu0 %1083
        %1087 = vset.pattern.permute.xlu0 0
        %1088 = vperm.xlu0 %1087, %v1074
        %v1089 = vpop.permute.xlu0 %1088
        %1092 = vset.pattern.permute.xlu0 0
        %1093 = vperm.xlu0 %1092, %v1075
        %v1094 = vpop.permute.xlu0 %1093
        %v1096 = vadd.f32 %v1067, %v1079
        %v1097 = vadd.f32 %v1068, %v1084
        %v1098 = vadd.f32 %v1069, %v1089
        %v1099 = vadd.f32 %v1070, %v1094
        %v1100 = vmax.f32 %v1096, 0.0
        %v1101 = vmax.f32 %v1097, 0.0
        %v1102 = vmax.f32 %v1098, 0.0
        %v1103 = vmax.f32 %v1099, 0.0
        %s1104 = scalar_lea.vmem %s5, 16
        %v1105 = vld [vmem:[%s1104] sm:$0xf]
        %v1106 = vld [vmem:[%s1104 + $0x4] sm:$0xf]
        %v1107 = vld [vmem:[%s1104 + $0x8] sm:$0xf]
        %v1108 = vld [vmem:[%s1104 + $0xc] sm:$0xf]
        %v1109 = vpack.c.bf16 %v1101, %v1100
        %v1110 = vpack.c.bf16 %v1103, %v1102
        %s1111 = scalar_lea.vmem %s6, 32
        %v1112 = vld [vmem:[%s1111] sm:$0xff]
        %v1113 = vld [vmem:[%s1111 + $0x8] sm:$0xff]
        %v1114 = vld [vmem:[%s1111 + $0x10] sm:$0xff]
        %v1115 = vld [vmem:[%s1111 + $0x18] sm:$0xff]
        %1117 = vset.pattern.permute.xlu0 0
        %1118 = vperm.xlu0 %1117, %v1112
        %v1119 = vpop.permute.xlu0 %1118
        %1122 = vset.pattern.permute.xlu0 0
        %1123 = vperm.xlu0 %1122, %v1113
        %v1124 = vpop.permute.xlu0 %1123
        %1127 = vset.pattern.permute.xlu0 0
        %1128 = vperm.xlu0 %1127, %v1114
        %v1129 = vpop.permute.xlu0 %1128
        %1132 = vset.pattern.permute.xlu0 0
        %1133 = vperm.xlu0 %1132, %v1115
        %v1134 = vpop.permute.xlu0 %1133
        %v1140 = vunpack.c.l.b16 %v1105
        %v1141 = vunpack.c.l.b16 %v1106
        %v1142 = vunpack.c.l.b16 %v1107
        %v1143 = vunpack.c.l.b16 %v1108
        %v1144 = vpack.c.b16 %v1141, %v1140
        %v1145 = vpack.c.b16 %v1143, %v1142
        %v1147 = vsel %vm429, %v1144, 0
        %v1150 = vsel %vm429, %v1145, 0
        %1152 = vmatprep.subr.bf16.mxu0 0
        %1153 = vmatpush1.bf16.msra.mxu0 %v1109
        %1154 = vmatprep.subr.bf16.mxu0 0
        %1155 = vmatpush1.bf16.msra.mxu0 %v1110
        %1156 = vmatprep.subr.bf16.mxu0 0
        %1157 = vmatpush1.bf16.msra.mxu0 0
        %1158 = vmatprep.subr.bf16.mxu0 0
        %1159 = vmatpush1.bf16.msra.mxu0 0
        %1160 = vmatprep.subr.bf16.mxu0 0
        %1161 = vmatpush1.bf16.msra.mxu0 0
        %1162 = vmatprep.subr.bf16.mxu0 0
        %1163 = vmatpush1.bf16.msra.mxu0 0
        %1164 = vmatprep.subr.bf16.mxu0 0
        %1165 = vmatpush1.bf16.msra.mxu0 0
        %1166 = vmatprep.subr.bf16.mxu0 0
        %1167 = vmatpush1.bf16.msra.mxu0 0
        %1168 = vmatprep.subr.bf16.mxu0 0
        %1169 = vmatpush1.bf16.msra.mxu0 0
        %1170 = vmatprep.subr.bf16.mxu0 0
        %1171 = vmatpush1.bf16.msra.mxu0 0
        %1172 = vmatprep.subr.bf16.mxu0 0
        %1173 = vmatpush1.bf16.msra.mxu0 0
        %1174 = vmatprep.subr.bf16.mxu0 0
        %1175 = vmatpush1.bf16.msra.mxu0 0
        %1176 = vmatprep.subr.bf16.mxu0 0
        %1177 = vmatpush1.bf16.msra.mxu0 0
        %1178 = vmatprep.subr.bf16.mxu0 0
        %1179 = vmatpush1.bf16.msra.mxu0 0
        %1180 = vmatprep.subr.bf16.mxu0 0
        %1181 = vmatpush1.bf16.msra.mxu0 0
        %1182 = vmatprep.subr.bf16.mxu0 0
        %1183 = vmatpush1.bf16.msra.mxu0 0
        %1184 = vmatprep.mubr.bf16.mxu0 0
        %1185 = vmatmul.mubr.bf16.gmra.mrb[0].mxu0 %v1147
        %v1186 = vpop.f32.mrb[0].mxu0
        %v1187 = vadd.f32 %v1119, %v1186
        %v1188 = vpop.f32.mrb[0].mxu0
        %v1189 = vpop.f32.mrb[0].mxu0
        %v1190 = vadd.f32 %v1124, %v1189
        %v1191 = vpop.f32.mrb[0].mxu0
        %1192 = vmatprep.mubr.bf16.mxu0 0
        %1193 = vmatmul.mubr.bf16.gmra.mrb[0].mxu0 %v1150
        %v1194 = vpop.f32.mrb[0].mxu0
        %v1195 = vadd.f32 %v1129, %v1194
        %v1196 = vpop.f32.mrb[0].mxu0
        %v1197 = vpop.f32.mrb[0].mxu0
        %v1198 = vadd.f32 %v1134, %v1197
        %v1199 = vpop.f32.mrb[0].mxu0
        %1200 = vdwg.mxu0
        %v1201 = vadd.f32 %v768, %v1187
        %v1202 = vadd.f32 %v769, %v1190
        %v1203 = vadd.f32 %v770, %v1195
        %v1204 = vadd.f32 %v771, %v1198
        %v1205 = vmul.f32 %v1201, %v335
        %v1206 = vmul.f32 %v1202, %v335
        %v1207 = vmul.f32 %v1203, %v335
        %v1208 = vmul.f32 %v1204, %v335
        // Predicated region
        $region65: #{tpu_custom_call.1} parent=43 // pred_check
          %p1209 = pneg %p325
        $region66: #{tpu_custom_call.1} parent=43 // pred_check_branch
          %1211 = sbr.rel (%p1209) target = $region68
        $region67: #{tpu_custom_call.1} parent=43 // pred_region
          %v1212 = vld [vmem:[#allocation4 + $0x8] sm:$0xff]
          %v1213 = vld [vmem:[#allocation4 + $0x18] sm:$0xff]
          %v1214 = vld [vmem:[#allocation4 + $0x28] sm:$0xff]
          %v1215 = vld [vmem:[#allocation4 + $0x38] sm:$0xff]
          %vm1216 = vcmask 1048512
          %1217 = vst.msk [vmem:[#allocation4] sm:$0xff] %vm1216, %v1212
          %1218 = vst.msk [vmem:[#allocation4 + $0x10] sm:$0xff] %vm1216, %v1213
          %1219 = vst.msk [vmem:[#allocation4 + $0x20] sm:$0xff] %vm1216, %v1214
          %1220 = vst.msk [vmem:[#allocation4 + $0x30] sm:$0xff] %vm1216, %v1215
        $region68: #{tpu_custom_call.1} parent=43 // pred_fallthru
          _
        %1221 = vst [vmem:[#allocation4 + $0x8] sm:$0xff] %v1205
        %1222 = vst [vmem:[#allocation4 + $0x18] sm:$0xff] %v1206
        %1223 = vst [vmem:[#allocation4 + $0x28] sm:$0xff] %v1207
        %1224 = vst [vmem:[#allocation4 + $0x38] sm:$0xff] %v1208
        // Predicated region
        $region69: #{tpu_custom_call.1} parent=43 // pred_check
          %p1225 = pneg %p324
        $region70: #{tpu_custom_call.1} parent=43 // pred_check_branch
          %1227 = sbr.rel (%p1225) target = $region72
        $region71: #{tpu_custom_call.1} parent=43 // pred_region
          %1229 = vset.pattern.permute.xlu0 0
          %1230 = vperm.xlu0 %1229, %v1205
          %v1231 = vpop.permute.xlu0 %1230
          %1234 = vset.pattern.permute.xlu0 0
          %1235 = vperm.xlu0 %1234, %v1206
          %v1236 = vpop.permute.xlu0 %1235
          %1239 = vset.pattern.permute.xlu0 0
          %1240 = vperm.xlu0 %1239, %v1207
          %v1241 = vpop.permute.xlu0 %1240
          %1244 = vset.pattern.permute.xlu0 0
          %1245 = vperm.xlu0 %1244, %v1208
          %v1246 = vpop.permute.xlu0 %1245
          %vm1248 = vcmask 1048512
          %1249 = vst.msk [vmem:[#allocation4] sm:$0xff] %vm1248, %v1231
          %1250 = vst.msk [vmem:[#allocation4 + $0x10] sm:$0xff] %vm1248, %v1236
          %1251 = vst.msk [vmem:[#allocation4 + $0x20] sm:$0xff] %vm1248, %v1241
          %1252 = vst.msk [vmem:[#allocation4 + $0x30] sm:$0xff] %vm1248, %v1246
        $region72: #{tpu_custom_call.1} parent=43 // pred_fallthru
          _
        %v1253 = vld [vmem:[#allocation4] sm:$0xff]
        %v1254 = vld [vmem:[#allocation4 + $0x8] sm:$0xff]
        %v1255 = vld [vmem:[#allocation4 + $0x10] sm:$0xff]
        %v1256 = vld [vmem:[#allocation4 + $0x18] sm:$0xff]
        %v1257 = vld [vmem:[#allocation4 + $0x20] sm:$0xff]
        %v1258 = vld [vmem:[#allocation4 + $0x28] sm:$0xff]
        %v1259 = vld [vmem:[#allocation4 + $0x30] sm:$0xff]
        %v1260 = vld [vmem:[#allocation4 + $0x38] sm:$0xff]
        %v1261 = vpack.c.bf16 %v1255, %v1253
        %v1262 = vpack.c.bf16 %v1256, %v1254
        %v1263 = vpack.c.bf16 %v1259, %v1257
        %v1264 = vpack.c.bf16 %v1260, %v1258
        %s1265 = scalar_lea.vmem %s3, 96
        %v1266 = vld [vmem:[%s1265] sm:$0xf]
        %v1267 = vld [vmem:[%s1265 + $0x4] sm:$0xf]
        %v1268 = vld [vmem:[%s1265 + $0x8] sm:$0xf]
        %v1269 = vld [vmem:[%s1265 + $0xc] sm:$0xf]
        %s1270 = scalar_lea.vmem %s3, 112
        %v1271 = vld [vmem:[%s1270] sm:$0xf]
        %v1272 = vld [vmem:[%s1270 + $0x4] sm:$0xf]
        %v1273 = vld [vmem:[%s1270 + $0x8] sm:$0xf]
        %v1274 = vld [vmem:[%s1270 + $0xc] sm:$0xf]
        %v1279 = vunpack.c.l.b16 %v1271
        %v1280 = vunpack.c.l.b16 %v1272
        %v1281 = vunpack.c.l.b16 %v1273
        %v1282 = vunpack.c.l.b16 %v1274
        %v1283 = vpack.c.b16 %v1280, %v1279
        %v1284 = vpack.c.b16 %v1282, %v1281
        %1289 = vrot.lane.b32.xlu0 %v1261, 4
        %v1290 = vpop.permute.xlu0 %1289
        %1291 = vrot.lane.b32.xlu0 %v1262, 4
        %v1292 = vpop.permute.xlu0 %1291
        %1293 = vrot.lane.b32.xlu0 %v1263, 4
        %v1294 = vpop.permute.xlu0 %1293
        %1295 = vrot.lane.b32.xlu0 %v1264, 4
        %v1296 = vpop.permute.xlu0 %1295
        %v1297 = vsel %vm937, %v1290, %v1292
        %v1298 = vsel %vm937, %v1294, %v1296
        %v1302 = vsel %vm429, %v1283, 0
        %v1305 = vsel %vm429, %v1284, 0
        %1307 = vmatprep.subr.bf16.mxu0 0
        %1308 = vmatpush1.bf16.msra.mxu0 %v1297
        %1309 = vmatprep.subr.bf16.mxu0 0
        %1310 = vmatpush1.bf16.msra.mxu0 %v1298
        %1311 = vmatprep.subr.bf16.mxu0 0
        %1312 = vmatpush1.bf16.msra.mxu0 0
        %1313 = vmatprep.subr.bf16.mxu0 0
        %1314 = vmatpush1.bf16.msra.mxu0 0
        %1315 = vmatprep.subr.bf16.mxu0 0
        %1316 = vmatpush1.bf16.msra.mxu0 0
        %1317 = vmatprep.subr.bf16.mxu0 0
        %1318 = vmatpush1.bf16.msra.mxu0 0
        %1319 = vmatprep.subr.bf16.mxu0 0
        %1320 = vmatpush1.bf16.msra.mxu0 0
        %1321 = vmatprep.subr.bf16.mxu0 0
        %1322 = vmatpush1.bf16.msra.mxu0 0
        %1323 = vmatprep.subr.bf16.mxu0 0
        %1324 = vmatpush1.bf16.msra.mxu0 0
        %1325 = vmatprep.subr.bf16.mxu0 0
        %1326 = vmatpush1.bf16.msra.mxu0 0
        %1327 = vmatprep.subr.bf16.mxu0 0
        %1328 = vmatpush1.bf16.msra.mxu0 0
        %1329 = vmatprep.subr.bf16.mxu0 0
        %1330 = vmatpush1.bf16.msra.mxu0 0
        %1331 = vmatprep.subr.bf16.mxu0 0
        %1332 = vmatpush1.bf16.msra.mxu0 0
        %1333 = vmatprep.subr.bf16.mxu0 0
        %1334 = vmatpush1.bf16.msra.mxu0 0
        %1335 = vmatprep.subr.bf16.mxu0 0
        %1336 = vmatpush1.bf16.msra.mxu0 0
        %1337 = vmatprep.subr.bf16.mxu0 0
        %1338 = vmatpush1.bf16.msra.mxu0 0
        %1339 = vmatprep.mubr.bf16.mxu0 0
        %1340 = vmatmul.mubr.bf16.gmra.mrb[0].mxu0 %v1302
        %v1341 = vpop.f32.mrb[0].mxu0
        %v1342 = vadd.f32 0.0, %v1341
        %v1343 = vpop.f32.mrb[0].mxu0
        %v1344 = vpop.f32.mrb[0].mxu0
        %v1345 = vadd.f32 0.0, %v1344
        %v1346 = vpop.f32.mrb[0].mxu0
        %1347 = vmatprep.mubr.bf16.mxu0 0
        %1348 = vmatmul.mubr.bf16.gmra.mrb[0].mxu0 %v1305
        %v1349 = vpop.f32.mrb[0].mxu0
        %v1350 = vadd.f32 0.0, %v1349
        %v1351 = vpop.f32.mrb[0].mxu0
        %v1352 = vpop.f32.mrb[0].mxu0
        %v1353 = vadd.f32 0.0, %v1352
        %v1354 = vpop.f32.mrb[0].mxu0
        %1355 = vdwg.mxu0
        %v1360 = vunpack.c.l.b16 %v1266
        %v1361 = vunpack.c.l.b16 %v1267
        %v1362 = vunpack.c.l.b16 %v1268
        %v1363 = vunpack.c.l.b16 %v1269
        %v1364 = vpack.c.b16 %v1361, %v1360
        %v1365 = vpack.c.b16 %v1363, %v1362
        %1366 = vrot.lane.b32.xlu0 %v1261, 8
        %v1367 = vpop.permute.xlu0 %1366
        %1368 = vrot.lane.b32.xlu0 %v1262, 8
        %v1369 = vpop.permute.xlu0 %1368
        %1370 = vrot.lane.b32.xlu0 %v1263, 8
        %v1371 = vpop.permute.xlu0 %1370
        %1372 = vrot.lane.b32.xlu0 %v1264, 8
        %v1373 = vpop.permute.xlu0 %1372
        %vm1374 = vcmask 64512
        %v1375 = vsel %vm1374, %v1367, %v1369
        %v1376 = vsel %vm1374, %v1371, %v1373
        %v1380 = vsel %vm429, %v1364, 0
        %v1383 = vsel %vm429, %v1365, 0
        %1385 = vmatprep.subr.bf16.mxu0 0
        %1386 = vmatpush1.bf16.msra.mxu0 %v1375
        %1387 = vmatprep.subr.bf16.mxu0 0
        %1388 = vmatpush1.bf16.msra.mxu0 %v1376
        %1389 = vmatprep.subr.bf16.mxu0 0
        %1390 = vmatpush1.bf16.msra.mxu0 0
        %1391 = vmatprep.subr.bf16.mxu0 0
        %1392 = vmatpush1.bf16.msra.mxu0 0
        %1393 = vmatprep.subr.bf16.mxu0 0
        %1394 = vmatpush1.bf16.msra.mxu0 0
        %1395 = vmatprep.subr.bf16.mxu0 0
        %1396 = vmatpush1.bf16.msra.mxu0 0
        %1397 = vmatprep.subr.bf16.mxu0 0
        %1398 = vmatpush1.bf16.msra.mxu0 0
        %1399 = vmatprep.subr.bf16.mxu0 0
        %1400 = vmatpush1.bf16.msra.mxu0 0
        %1401 = vmatprep.subr.bf16.mxu0 0
        %1402 = vmatpush1.bf16.msra.mxu0 0
        %1403 = vmatprep.subr.bf16.mxu0 0
        %1404 = vmatpush1.bf16.msra.mxu0 0
        %1405 = vmatprep.subr.bf16.mxu0 0
        %1406 = vmatpush1.bf16.msra.mxu0 0
        %1407 = vmatprep.subr.bf16.mxu0 0
        %1408 = vmatpush1.bf16.msra.mxu0 0
        %1409 = vmatprep.subr.bf16.mxu0 0
        %1410 = vmatpush1.bf16.msra.mxu0 0
        %1411 = vmatprep.subr.bf16.mxu0 0
        %1412 = vmatpush1.bf16.msra.mxu0 0
        %1413 = vmatprep.subr.bf16.mxu0 0
        %1414 = vmatpush1.bf16.msra.mxu0 0
        %1415 = vmatprep.subr.bf16.mxu0 0
        %1416 = vmatpush1.bf16.msra.mxu0 0
        %1417 = vmatprep.mubr.bf16.mxu0 0
        %1418 = vmatmul.mubr.bf16.gmra.mrb[0].mxu0 %v1380
        %v1419 = vpop.f32.mrb[0].mxu0
        %v1420 = vadd.f32 %v1342, %v1419
        %v1421 = vpop.f32.mrb[0].mxu0
        %v1422 = vpop.f32.mrb[0].mxu0
        %v1423 = vadd.f32 %v1345, %v1422
        %v1424 = vpop.f32.mrb[0].mxu0
        %1425 = vmatprep.mubr.bf16.mxu0 0
        %1426 = vmatmul.mubr.bf16.gmra.mrb[0].mxu0 %v1383
        %v1427 = vpop.f32.mrb[0].mxu0
        %v1428 = vadd.f32 %v1350, %v1427
        %v1429 = vpop.f32.mrb[0].mxu0
        %v1430 = vpop.f32.mrb[0].mxu0
        %v1431 = vadd.f32 %v1353, %v1430
        %v1432 = vpop.f32.mrb[0].mxu0
        %1433 = vdwg.mxu0
        %s1434 = scalar_lea.vmem %s3, 128
        %v1435 = vld [vmem:[%s1434] sm:$0xf]
        %v1436 = vld [vmem:[%s1434 + $0x4] sm:$0xf]
        %v1437 = vld [vmem:[%s1434 + $0x8] sm:$0xf]
        %v1438 = vld [vmem:[%s1434 + $0xc] sm:$0xf]
        %v1443 = vunpack.c.l.b16 %v1435
        %v1444 = vunpack.c.l.b16 %v1436
        %v1445 = vunpack.c.l.b16 %v1437
        %v1446 = vunpack.c.l.b16 %v1438
        %v1447 = vpack.c.b16 %v1444, %v1443
        %v1448 = vpack.c.b16 %v1446, %v1445
        %v1450 = vsel %vm429, %v1447, 0
        %v1453 = vsel %vm429, %v1448, 0
        %1455 = vmatprep.subr.bf16.mxu0 0
        %1456 = vmatpush1.bf16.msra.mxu0 %v1262
        %1457 = vmatprep.subr.bf16.mxu0 0
        %1458 = vmatpush1.bf16.msra.mxu0 %v1264
        %1459 = vmatprep.subr.bf16.mxu0 0
        %1460 = vmatpush1.bf16.msra.mxu0 0
        %1461 = vmatprep.subr.bf16.mxu0 0
        %1462 = vmatpush1.bf16.msra.mxu0 0
        %1463 = vmatprep.subr.bf16.mxu0 0
        %1464 = vmatpush1.bf16.msra.mxu0 0
        %1465 = vmatprep.subr.bf16.mxu0 0
        %1466 = vmatpush1.bf16.msra.mxu0 0
        %1467 = vmatprep.subr.bf16.mxu0 0
        %1468 = vmatpush1.bf16.msra.mxu0 0
        %1469 = vmatprep.subr.bf16.mxu0 0
        %1470 = vmatpush1.bf16.msra.mxu0 0
        %1471 = vmatprep.subr.bf16.mxu0 0
        %1472 = vmatpush1.bf16.msra.mxu0 0
        %1473 = vmatprep.subr.bf16.mxu0 0
        %1474 = vmatpush1.bf16.msra.mxu0 0
        %1475 = vmatprep.subr.bf16.mxu0 0
        %1476 = vmatpush1.bf16.msra.mxu0 0
        %1477 = vmatprep.subr.bf16.mxu0 0
        %1478 = vmatpush1.bf16.msra.mxu0 0
        %1479 = vmatprep.subr.bf16.mxu0 0
        %1480 = vmatpush1.bf16.msra.mxu0 0
        %1481 = vmatprep.subr.bf16.mxu0 0
        %1482 = vmatpush1.bf16.msra.mxu0 0
        %1483 = vmatprep.subr.bf16.mxu0 0
        %1484 = vmatpush1.bf16.msra.mxu0 0
        %1485 = vmatprep.subr.bf16.mxu0 0
        %1486 = vmatpush1.bf16.msra.mxu0 0
        %1487 = vmatprep.mubr.bf16.mxu0 0
        %1488 = vmatmul.mubr.bf16.gmra.mrb[0].mxu0 %v1450
        %v1489 = vpop.f32.mrb[0].mxu0
        %v1490 = vadd.f32 0.0, %v1489
        %v1491 = vpop.f32.mrb[0].mxu0
        %v1492 = vpop.f32.mrb[0].mxu0
        %v1493 = vadd.f32 0.0, %v1492
        %v1494 = vpop.f32.mrb[0].mxu0
        %1495 = vmatprep.mubr.bf16.mxu0 0
        %1496 = vmatmul.mubr.bf16.gmra.mrb[0].mxu0 %v1453
        %v1497 = vpop.f32.mrb[0].mxu0
        %v1498 = vadd.f32 0.0, %v1497
        %v1499 = vpop.f32.mrb[0].mxu0
        %v1500 = vpop.f32.mrb[0].mxu0
        %v1501 = vadd.f32 0.0, %v1500
        %v1502 = vpop.f32.mrb[0].mxu0
        %1503 = vdwg.mxu0
        %v1504 = vadd.f32 %v1420, %v1490
        %v1505 = vadd.f32 %v1423, %v1493
        %v1506 = vadd.f32 %v1428, %v1498
        %v1507 = vadd.f32 %v1431, %v1501
        %s1508 = scalar_lea.vmem %s4, 64
        %v1509 = vld [vmem:[%s1508] sm:$0xff]
        %v1510 = vld [vmem:[%s1508 + $0x8] sm:$0xff]
        %v1511 = vld [vmem:[%s1508 + $0x10] sm:$0xff]
        %v1512 = vld [vmem:[%s1508 + $0x18] sm:$0xff]
        %1514 = vset.pattern.permute.xlu0 0
        %1515 = vperm.xlu0 %1514, %v1509
        %v1516 = vpop.permute.xlu0 %1515
        %1519 = vset.pattern.permute.xlu0 0
        %1520 = vperm.xlu0 %1519, %v1510
        %v1521 = vpop.permute.xlu0 %1520
        %1524 = vset.pattern.permute.xlu0 0
        %1525 = vperm.xlu0 %1524, %v1511
        %v1526 = vpop.permute.xlu0 %1525
        %1529 = vset.pattern.permute.xlu0 0
        %1530 = vperm.xlu0 %1529, %v1512
        %v1531 = vpop.permute.xlu0 %1530
        %v1533 = vadd.f32 %v1504, %v1516
        %v1534 = vadd.f32 %v1505, %v1521
        %v1535 = vadd.f32 %v1506, %v1526
        %v1536 = vadd.f32 %v1507, %v1531
        %v1537 = vmax.f32 %v1533, 0.0
        %v1538 = vmax.f32 %v1534, 0.0
        %v1539 = vmax.f32 %v1535, 0.0
        %v1540 = vmax.f32 %v1536, 0.0
        %s1541 = scalar_lea.vmem %s5, 32
        %v1542 = vld [vmem:[%s1541] sm:$0xf]
        %v1543 = vld [vmem:[%s1541 + $0x4] sm:$0xf]
        %v1544 = vld [vmem:[%s1541 + $0x8] sm:$0xf]
        %v1545 = vld [vmem:[%s1541 + $0xc] sm:$0xf]
        %v1546 = vpack.c.bf16 %v1538, %v1537
        %v1547 = vpack.c.bf16 %v1540, %v1539
        %s1548 = scalar_lea.vmem %s6, 64
        %v1549 = vld [vmem:[%s1548] sm:$0xff]
        %v1550 = vld [vmem:[%s1548 + $0x8] sm:$0xff]
        %v1551 = vld [vmem:[%s1548 + $0x10] sm:$0xff]
        %v1552 = vld [vmem:[%s1548 + $0x18] sm:$0xff]
        %1554 = vset.pattern.permute.xlu0 0
        %1555 = vperm.xlu0 %1554, %v1549
        %v1556 = vpop.permute.xlu0 %1555
        %1559 = vset.pattern.permute.xlu0 0
        %1560 = vperm.xlu0 %1559, %v1550
        %v1561 = vpop.permute.xlu0 %1560
        %1564 = vset.pattern.permute.xlu0 0
        %1565 = vperm.xlu0 %1564, %v1551
        %v1566 = vpop.permute.xlu0 %1565
        %1569 = vset.pattern.permute.xlu0 0
        %1570 = vperm.xlu0 %1569, %v1552
        %v1571 = vpop.permute.xlu0 %1570
        %v1577 = vunpack.c.l.b16 %v1542
        %v1578 = vunpack.c.l.b16 %v1543
        %v1579 = vunpack.c.l.b16 %v1544
        %v1580 = vunpack.c.l.b16 %v1545
        %v1581 = vpack.c.b16 %v1578, %v1577
        %v1582 = vpack.c.b16 %v1580, %v1579
        %v1584 = vsel %vm429, %v1581, 0
        %v1587 = vsel %vm429, %v1582, 0
        %1589 = vmatprep.subr.bf16.mxu0 0
        %1590 = vmatpush1.bf16.msra.mxu0 %v1546
        %1591 = vmatprep.subr.bf16.mxu0 0
        %1592 = vmatpush1.bf16.msra.mxu0 %v1547
        %1593 = vmatprep.subr.bf16.mxu0 0
        %1594 = vmatpush1.bf16.msra.mxu0 0
        %1595 = vmatprep.subr.bf16.mxu0 0
        %1596 = vmatpush1.bf16.msra.mxu0 0
        %1597 = vmatprep.subr.bf16.mxu0 0
        %1598 = vmatpush1.bf16.msra.mxu0 0
        %1599 = vmatprep.subr.bf16.mxu0 0
        %1600 = vmatpush1.bf16.msra.mxu0 0
        %1601 = vmatprep.subr.bf16.mxu0 0
        %1602 = vmatpush1.bf16.msra.mxu0 0
        %1603 = vmatprep.subr.bf16.mxu0 0
        %1604 = vmatpush1.bf16.msra.mxu0 0
        %1605 = vmatprep.subr.bf16.mxu0 0
        %1606 = vmatpush1.bf16.msra.mxu0 0
        %1607 = vmatprep.subr.bf16.mxu0 0
        %1608 = vmatpush1.bf16.msra.mxu0 0
        %1609 = vmatprep.subr.bf16.mxu0 0
        %1610 = vmatpush1.bf16.msra.mxu0 0
        %1611 = vmatprep.subr.bf16.mxu0 0
        %1612 = vmatpush1.bf16.msra.mxu0 0
        %1613 = vmatprep.subr.bf16.mxu0 0
        %1614 = vmatpush1.bf16.msra.mxu0 0
        %1615 = vmatprep.subr.bf16.mxu0 0
        %1616 = vmatpush1.bf16.msra.mxu0 0
        %1617 = vmatprep.subr.bf16.mxu0 0
        %1618 = vmatpush1.bf16.msra.mxu0 0
        %1619 = vmatprep.subr.bf16.mxu0 0
        %1620 = vmatpush1.bf16.msra.mxu0 0
        %1621 = vmatprep.mubr.bf16.mxu0 0
        %1622 = vmatmul.mubr.bf16.gmra.mrb[0].mxu0 %v1584
        %v1623 = vpop.f32.mrb[0].mxu0
        %v1624 = vadd.f32 %v1556, %v1623
        %v1625 = vpop.f32.mrb[0].mxu0
        %v1626 = vpop.f32.mrb[0].mxu0
        %v1627 = vadd.f32 %v1561, %v1626
        %v1628 = vpop.f32.mrb[0].mxu0
        %1629 = vmatprep.mubr.bf16.mxu0 0
        %1630 = vmatmul.mubr.bf16.gmra.mrb[0].mxu0 %v1587
        %v1631 = vpop.f32.mrb[0].mxu0
        %v1632 = vadd.f32 %v1566, %v1631
        %v1633 = vpop.f32.mrb[0].mxu0
        %v1634 = vpop.f32.mrb[0].mxu0
        %v1635 = vadd.f32 %v1571, %v1634
        %v1636 = vpop.f32.mrb[0].mxu0
        %1637 = vdwg.mxu0
        %v1638 = vadd.f32 %v1205, %v1624
        %v1639 = vadd.f32 %v1206, %v1627
        %v1640 = vadd.f32 %v1207, %v1632
        %v1641 = vadd.f32 %v1208, %v1635
        %v1642 = vmul.f32 %v1638, %v335
        %v1643 = vmul.f32 %v1639, %v335
        %v1644 = vmul.f32 %v1640, %v335
        %v1645 = vmul.f32 %v1641, %v335
        // Predicated region
        $region73: #{tpu_custom_call.1} parent=43 // pred_check
          %p1646 = pneg %p325
        $region74: #{tpu_custom_call.1} parent=43 // pred_check_branch
          %1648 = sbr.rel (%p1646) target = $region76
        $region75: #{tpu_custom_call.1} parent=43 // pred_region
          %v1649 = vld [vmem:[#allocation5 + $0x8] sm:$0xff]
          %v1650 = vld [vmem:[#allocation5 + $0x18] sm:$0xff]
          %v1651 = vld [vmem:[#allocation5 + $0x28] sm:$0xff]
          %v1652 = vld [vmem:[#allocation5 + $0x38] sm:$0xff]
          %vm1653 = vcmask 1048448
          %1654 = vst.msk [vmem:[#allocation5] sm:$0xff] %vm1653, %v1649
          %1655 = vst.msk [vmem:[#allocation5 + $0x10] sm:$0xff] %vm1653, %v1650
          %1656 = vst.msk [vmem:[#allocation5 + $0x20] sm:$0xff] %vm1653, %v1651
          %1657 = vst.msk [vmem:[#allocation5 + $0x30] sm:$0xff] %vm1653, %v1652
        $region76: #{tpu_custom_call.1} parent=43 // pred_fallthru
          _
        %1658 = vst [vmem:[#allocation5 + $0x8] sm:$0xff] %v1642
        %1659 = vst [vmem:[#allocation5 + $0x18] sm:$0xff] %v1643
        %1660 = vst [vmem:[#allocation5 + $0x28] sm:$0xff] %v1644
        %1661 = vst [vmem:[#allocation5 + $0x38] sm:$0xff] %v1645
        // Predicated region
        $region77: #{tpu_custom_call.1} parent=43 // pred_check
          %p1662 = pneg %p324
        $region78: #{tpu_custom_call.1} parent=43 // pred_check_branch
          %1664 = sbr.rel (%p1662) target = $region80
        $region79: #{tpu_custom_call.1} parent=43 // pred_region
          %1666 = vset.pattern.permute.xlu0 0
          %1667 = vperm.xlu0 %1666, %v1642
          %v1668 = vpop.permute.xlu0 %1667
          %1671 = vset.pattern.permute.xlu0 0
          %1672 = vperm.xlu0 %1671, %v1643
          %v1673 = vpop.permute.xlu0 %1672
          %1676 = vset.pattern.permute.xlu0 0
          %1677 = vperm.xlu0 %1676, %v1644
          %v1678 = vpop.permute.xlu0 %1677
          %1681 = vset.pattern.permute.xlu0 0
          %1682 = vperm.xlu0 %1681, %v1645
          %v1683 = vpop.permute.xlu0 %1682
          %vm1685 = vcmask 1048448
          %1686 = vst.msk [vmem:[#allocation5] sm:$0xff] %vm1685, %v1668
          %1687 = vst.msk [vmem:[#allocation5 + $0x10] sm:$0xff] %vm1685, %v1673
          %1688 = vst.msk [vmem:[#allocation5 + $0x20] sm:$0xff] %vm1685, %v1678
          %1689 = vst.msk [vmem:[#allocation5 + $0x30] sm:$0xff] %vm1685, %v1683
        $region80: #{tpu_custom_call.1} parent=43 // pred_fallthru
          _
        %v1690 = vld [vmem:[#allocation5] sm:$0xff]
        %v1691 = vld [vmem:[#allocation5 + $0x8] sm:$0xff]
        %v1692 = vld [vmem:[#allocation5 + $0x10] sm:$0xff]
        %v1693 = vld [vmem:[#allocation5 + $0x18] sm:$0xff]
        %v1694 = vld [vmem:[#allocation5 + $0x20] sm:$0xff]
        %v1695 = vld [vmem:[#allocation5 + $0x28] sm:$0xff]
        %v1696 = vld [vmem:[#allocation5 + $0x30] sm:$0xff]
        %v1697 = vld [vmem:[#allocation5 + $0x38] sm:$0xff]
        %v1698 = vpack.c.bf16 %v1692, %v1690
        %v1699 = vpack.c.bf16 %v1693, %v1691
        %v1700 = vpack.c.bf16 %v1696, %v1694
        %v1701 = vpack.c.bf16 %v1697, %v1695
        %s1702 = scalar_lea.vmem %s3, 144
        %v1703 = vld [vmem:[%s1702] sm:$0xf]
        %v1704 = vld [vmem:[%s1702 + $0x4] sm:$0xf]
        %v1705 = vld [vmem:[%s1702 + $0x8] sm:$0xf]
        %v1706 = vld [vmem:[%s1702 + $0xc] sm:$0xf]
        %s1707 = scalar_lea.vmem %s3, 160
        %v1708 = vld [vmem:[%s1707] sm:$0xf]
        %v1709 = vld [vmem:[%s1707 + $0x4] sm:$0xf]
        %v1710 = vld [vmem:[%s1707 + $0x8] sm:$0xf]
        %v1711 = vld [vmem:[%s1707 + $0xc] sm:$0xf]
        %v1716 = vunpack.c.l.b16 %v1708
        %v1717 = vunpack.c.l.b16 %v1709
        %v1718 = vunpack.c.l.b16 %v1710
        %v1719 = vunpack.c.l.b16 %v1711
        %v1720 = vpack.c.b16 %v1717, %v1716
        %v1721 = vpack.c.b16 %v1719, %v1718
        %1726 = vrot.lane.b32.xlu0 %v1698, 8
        %v1727 = vpop.permute.xlu0 %1726
        %1728 = vrot.lane.b32.xlu0 %v1699, 8
        %v1729 = vpop.permute.xlu0 %1728
        %1730 = vrot.lane.b32.xlu0 %v1700, 8
        %v1731 = vpop.permute.xlu0 %1730
        %1732 = vrot.lane.b32.xlu0 %v1701, 8
        %v1733 = vpop.permute.xlu0 %1732
        %v1734 = vsel %vm1374, %v1727, %v1729
        %v1735 = vsel %vm1374, %v1731, %v1733
        %v1739 = vsel %vm429, %v1720, 0
        %v1742 = vsel %vm429, %v1721, 0
        %1744 = vmatprep.subr.bf16.mxu0 0
        %1745 = vmatpush1.bf16.msra.mxu0 %v1734
        %1746 = vmatprep.subr.bf16.mxu0 0
        %1747 = vmatpush1.bf16.msra.mxu0 %v1735
        %1748 = vmatprep.subr.bf16.mxu0 0
        %1749 = vmatpush1.bf16.msra.mxu0 0
        %1750 = vmatprep.subr.bf16.mxu0 0
        %1751 = vmatpush1.bf16.msra.mxu0 0
        %1752 = vmatprep.subr.bf16.mxu0 0
        %1753 = vmatpush1.bf16.msra.mxu0 0
        %1754 = vmatprep.subr.bf16.mxu0 0
        %1755 = vmatpush1.bf16.msra.mxu0 0
        %1756 = vmatprep.subr.bf16.mxu0 0
        %1757 = vmatpush1.bf16.msra.mxu0 0
        %1758 = vmatprep.subr.bf16.mxu0 0
        %1759 = vmatpush1.bf16.msra.mxu0 0
        %1760 = vmatprep.subr.bf16.mxu0 0
        %1761 = vmatpush1.bf16.msra.mxu0 0
        %1762 = vmatprep.subr.bf16.mxu0 0
        %1763 = vmatpush1.bf16.msra.mxu0 0
        %1764 = vmatprep.subr.bf16.mxu0 0
        %1765 = vmatpush1.bf16.msra.mxu0 0
        %1766 = vmatprep.subr.bf16.mxu0 0
        %1767 = vmatpush1.bf16.msra.mxu0 0
        %1768 = vmatprep.subr.bf16.mxu0 0
        %1769 = vmatpush1.bf16.msra.mxu0 0
        %1770 = vmatprep.subr.bf16.mxu0 0
        %1771 = vmatpush1.bf16.msra.mxu0 0
        %1772 = vmatprep.subr.bf16.mxu0 0
        %1773 = vmatpush1.bf16.msra.mxu0 0
        %1774 = vmatprep.subr.bf16.mxu0 0
        %1775 = vmatpush1.bf16.msra.mxu0 0
        %1776 = vmatprep.mubr.bf16.mxu0 0
        %1777 = vmatmul.mubr.bf16.gmra.mrb[0].mxu0 %v1739
        %v1778 = vpop.f32.mrb[0].mxu0
        %v1779 = vadd.f32 0.0, %v1778
        %v1780 = vpop.f32.mrb[0].mxu0
        %v1781 = vpop.f32.mrb[0].mxu0
        %v1782 = vadd.f32 0.0, %v1781
        %v1783 = vpop.f32.mrb[0].mxu0
        %1784 = vmatprep.mubr.bf16.mxu0 0
        %1785 = vmatmul.mubr.bf16.gmra.mrb[0].mxu0 %v1742
        %v1786 = vpop.f32.mrb[0].mxu0
        %v1787 = vadd.f32 0.0, %v1786
        %v1788 = vpop.f32.mrb[0].mxu0
        %v1789 = vpop.f32.mrb[0].mxu0
        %v1790 = vadd.f32 0.0, %v1789
        %v1791 = vpop.f32.mrb[0].mxu0
        %1792 = vdwg.mxu0
        %v1797 = vunpack.c.l.b16 %v1703
        %v1798 = vunpack.c.l.b16 %v1704
        %v1799 = vunpack.c.l.b16 %v1705
        %v1800 = vunpack.c.l.b16 %v1706
        %v1801 = vpack.c.b16 %v1798, %v1797
        %v1802 = vpack.c.b16 %v1800, %v1799
        %1803 = vrot.lane.b32.xlu0 %v1698, 16
        %v1804 = vpop.permute.xlu0 %1803
        %1805 = vrot.lane.b32.xlu0 %v1699, 16
        %v1806 = vpop.permute.xlu0 %1805
        %1807 = vrot.lane.b32.xlu0 %v1700, 16
        %v1808 = vpop.permute.xlu0 %1807
        %1809 = vrot.lane.b32.xlu0 %v1701, 16
        %v1810 = vpop.permute.xlu0 %1809
        %vm1811 = vcmask 130048
        %v1812 = vsel %vm1811, %v1804, %v1806
        %v1813 = vsel %vm1811, %v1808, %v1810
        %v1817 = vsel %vm429, %v1801, 0
        %v1820 = vsel %vm429, %v1802, 0
        %1822 = vmatprep.subr.bf16.mxu0 0
        %1823 = vmatpush1.bf16.msra.mxu0 %v1812
        %1824 = vmatprep.subr.bf16.mxu0 0
        %1825 = vmatpush1.bf16.msra.mxu0 %v1813
        %1826 = vmatprep.subr.bf16.mxu0 0
        %1827 = vmatpush1.bf16.msra.mxu0 0
        %1828 = vmatprep.subr.bf16.mxu0 0
        %1829 = vmatpush1.bf16.msra.mxu0 0
        %1830 = vmatprep.subr.bf16.mxu0 0
        %1831 = vmatpush1.bf16.msra.mxu0 0
        %1832 = vmatprep.subr.bf16.mxu0 0
        %1833 = vmatpush1.bf16.msra.mxu0 0
        %1834 = vmatprep.subr.bf16.mxu0 0
        %1835 = vmatpush1.bf16.msra.mxu0 0
        %1836 = vmatprep.subr.bf16.mxu0 0
        %1837 = vmatpush1.bf16.msra.mxu0 0
        %1838 = vmatprep.subr.bf16.mxu0 0
        %1839 = vmatpush1.bf16.msra.mxu0 0
        %1840 = vmatprep.subr.bf16.mxu0 0
        %1841 = vmatpush1.bf16.msra.mxu0 0
        %1842 = vmatprep.subr.bf16.mxu0 0
        %1843 = vmatpush1.bf16.msra.mxu0 0
        %1844 = vmatprep.subr.bf16.mxu0 0
        %1845 = vmatpush1.bf16.msra.mxu0 0
        %1846 = vmatprep.subr.bf16.mxu0 0
        %1847 = vmatpush1.bf16.msra.mxu0 0
        %1848 = vmatprep.subr.bf16.mxu0 0
        %1849 = vmatpush1.bf16.msra.mxu0 0
        %1850 = vmatprep.subr.bf16.mxu0 0
        %1851 = vmatpush1.bf16.msra.mxu0 0
        %1852 = vmatprep.subr.bf16.mxu0 0
        %1853 = vmatpush1.bf16.msra.mxu0 0
        %1854 = vmatprep.mubr.bf16.mxu0 0
        %1855 = vmatmul.mubr.bf16.gmra.mrb[0].mxu0 %v1817
        %v1856 = vpop.f32.mrb[0].mxu0
        %v1857 = vadd.f32 %v1779, %v1856
        %v1858 = vpop.f32.mrb[0].mxu0
        %v1859 = vpop.f32.mrb[0].mxu0
        %v1860 = vadd.f32 %v1782, %v1859
        %v1861 = vpop.f32.mrb[0].mxu0
        %1862 = vmatprep.mubr.bf16.mxu0 0
        %1863 = vmatmul.mubr.bf16.gmra.mrb[0].mxu0 %v1820
        %v1864 = vpop.f32.mrb[0].mxu0
        %v1865 = vadd.f32 %v1787, %v1864
        %v1866 = vpop.f32.mrb[0].mxu0
        %v1867 = vpop.f32.mrb[0].mxu0
        %v1868 = vadd.f32 %v1790, %v1867
        %v1869 = vpop.f32.mrb[0].mxu0
        %1870 = vdwg.mxu0
        %s1871 = scalar_lea.vmem %s3, 176
        %v1872 = vld [vmem:[%s1871] sm:$0xf]
        %v1873 = vld [vmem:[%s1871 + $0x4] sm:$0xf]
        %v1874 = vld [vmem:[%s1871 + $0x8] sm:$0xf]
        %v1875 = vld [vmem:[%s1871 + $0xc] sm:$0xf]
        %v1880 = vunpack.c.l.b16 %v1872
        %v1881 = vunpack.c.l.b16 %v1873
        %v1882 = vunpack.c.l.b16 %v1874
        %v1883 = vunpack.c.l.b16 %v1875
        %v1884 = vpack.c.b16 %v1881, %v1880
        %v1885 = vpack.c.b16 %v1883, %v1882
        %v1887 = vsel %vm429, %v1884, 0
        %v1890 = vsel %vm429, %v1885, 0
        %1892 = vmatprep.subr.bf16.mxu0 0
        %1893 = vmatpush1.bf16.msra.mxu0 %v1699
        %1894 = vmatprep.subr.bf16.mxu0 0
        %1895 = vmatpush1.bf16.msra.mxu0 %v1701
        %1896 = vmatprep.subr.bf16.mxu0 0
        %1897 = vmatpush1.bf16.msra.mxu0 0
        %1898 = vmatprep.subr.bf16.mxu0 0
        %1899 = vmatpush1.bf16.msra.mxu0 0
        %1900 = vmatprep.subr.bf16.mxu0 0
        %1901 = vmatpush1.bf16.msra.mxu0 0
        %1902 = vmatprep.subr.bf16.mxu0 0
        %1903 = vmatpush1.bf16.msra.mxu0 0
        %1904 = vmatprep.subr.bf16.mxu0 0
        %1905 = vmatpush1.bf16.msra.mxu0 0
        %1906 = vmatprep.subr.bf16.mxu0 0
        %1907 = vmatpush1.bf16.msra.mxu0 0
        %1908 = vmatprep.subr.bf16.mxu0 0
        %1909 = vmatpush1.bf16.msra.mxu0 0
        %1910 = vmatprep.subr.bf16.mxu0 0
        %1911 = vmatpush1.bf16.msra.mxu0 0
        %1912 = vmatprep.subr.bf16.mxu0 0
        %1913 = vmatpush1.bf16.msra.mxu0 0
        %1914 = vmatprep.subr.bf16.mxu0 0
        %1915 = vmatpush1.bf16.msra.mxu0 0
        %1916 = vmatprep.subr.bf16.mxu0 0
        %1917 = vmatpush1.bf16.msra.mxu0 0
        %1918 = vmatprep.subr.bf16.mxu0 0
        %1919 = vmatpush1.bf16.msra.mxu0 0
        %1920 = vmatprep.subr.bf16.mxu0 0
        %1921 = vmatpush1.bf16.msra.mxu0 0
        %1922 = vmatprep.subr.bf16.mxu0 0
        %1923 = vmatpush1.bf16.msra.mxu0 0
        %1924 = vmatprep.mubr.bf16.mxu0 0
        %1925 = vmatmul.mubr.bf16.gmra.mrb[0].mxu0 %v1887
        %v1926 = vpop.f32.mrb[0].mxu0
        %v1927 = vadd.f32 0.0, %v1926
        %v1928 = vpop.f32.mrb[0].mxu0
        %v1929 = vpop.f32.mrb[0].mxu0
        %v1930 = vadd.f32 0.0, %v1929
        %v1931 = vpop.f32.mrb[0].mxu0
        %1932 = vmatprep.mubr.bf16.mxu0 0
        %1933 = vmatmul.mubr.bf16.gmra.mrb[0].mxu0 %v1890
        %v1934 = vpop.f32.mrb[0].mxu0
        %v1935 = vadd.f32 0.0, %v1934
        %v1936 = vpop.f32.mrb[0].mxu0
        %v1937 = vpop.f32.mrb[0].mxu0
        %v1938 = vadd.f32 0.0, %v1937
        %v1939 = vpop.f32.mrb[0].mxu0
        %1940 = vdwg.mxu0
        %v1941 = vadd.f32 %v1857, %v1927
        %v1942 = vadd.f32 %v1860, %v1930
        %v1943 = vadd.f32 %v1865, %v1935
        %v1944 = vadd.f32 %v1868, %v1938
        %s1945 = scalar_lea.vmem %s4, 96
        %v1946 = vld [vmem:[%s1945] sm:$0xff]
        %v1947 = vld [vmem:[%s1945 + $0x8] sm:$0xff]
        %v1948 = vld [vmem:[%s1945 + $0x10] sm:$0xff]
        %v1949 = vld [vmem:[%s1945 + $0x18] sm:$0xff]
        %1951 = vset.pattern.permute.xlu0 0
        %1952 = vperm.xlu0 %1951, %v1946
        %v1953 = vpop.permute.xlu0 %1952
        %1956 = vset.pattern.permute.xlu0 0
        %1957 = vperm.xlu0 %1956, %v1947
        %v1958 = vpop.permute.xlu0 %1957
        %1961 = vset.pattern.permute.xlu0 0
        %1962 = vperm.xlu0 %1961, %v1948
        %v1963 = vpop.permute.xlu0 %1962
        %1966 = vset.pattern.permute.xlu0 0
        %1967 = vperm.xlu0 %1966, %v1949
        %v1968 = vpop.permute.xlu0 %1967
        %v1970 = vadd.f32 %v1941, %v1953
        %v1971 = vadd.f32 %v1942, %v1958
        %v1972 = vadd.f32 %v1943, %v1963
        %v1973 = vadd.f32 %v1944, %v1968
        %v1974 = vmax.f32 %v1970, 0.0
        %v1975 = vmax.f32 %v1971, 0.0
        %v1976 = vmax.f32 %v1972, 0.0
        %v1977 = vmax.f32 %v1973, 0.0
        %s1978 = scalar_lea.vmem %s5, 48
        %v1979 = vld [vmem:[%s1978] sm:$0xf]
        %v1980 = vld [vmem:[%s1978 + $0x4] sm:$0xf]
        %v1981 = vld [vmem:[%s1978 + $0x8] sm:$0xf]
        %v1982 = vld [vmem:[%s1978 + $0xc] sm:$0xf]
        %v1983 = vpack.c.bf16 %v1975, %v1974
        %v1984 = vpack.c.bf16 %v1977, %v1976
        %s1985 = scalar_lea.vmem %s6, 96
        %v1986 = vld [vmem:[%s1985] sm:$0xff]
        %v1987 = vld [vmem:[%s1985 + $0x8] sm:$0xff]
        %v1988 = vld [vmem:[%s1985 + $0x10] sm:$0xff]
        %v1989 = vld [vmem:[%s1985 + $0x18] sm:$0xff]
        %1991 = vset.pattern.permute.xlu0 0
        %1992 = vperm.xlu0 %1991, %v1986
        %v1993 = vpop.permute.xlu0 %1992
        %1996 = vset.pattern.permute.xlu0 0
        %1997 = vperm.xlu0 %1996, %v1987
        %v1998 = vpop.permute.xlu0 %1997
        %2001 = vset.pattern.permute.xlu0 0
        %2002 = vperm.xlu0 %2001, %v1988
        %v2003 = vpop.permute.xlu0 %2002
        %2006 = vset.pattern.permute.xlu0 0
        %2007 = vperm.xlu0 %2006, %v1989
        %v2008 = vpop.permute.xlu0 %2007
        %v2014 = vunpack.c.l.b16 %v1979
        %v2015 = vunpack.c.l.b16 %v1980
        %v2016 = vunpack.c.l.b16 %v1981
        %v2017 = vunpack.c.l.b16 %v1982
        %v2018 = vpack.c.b16 %v2015, %v2014
        %v2019 = vpack.c.b16 %v2017, %v2016
        %v2021 = vsel %vm429, %v2018, 0
        %v2024 = vsel %vm429, %v2019, 0
        %2026 = vmatprep.subr.bf16.mxu0 0
        %2027 = vmatpush1.bf16.msra.mxu0 %v1983
        %2028 = vmatprep.subr.bf16.mxu0 0
        %2029 = vmatpush1.bf16.msra.mxu0 %v1984
        %2030 = vmatprep.subr.bf16.mxu0 0
        %2031 = vmatpush1.bf16.msra.mxu0 0
        %2032 = vmatprep.subr.bf16.mxu0 0
        %2033 = vmatpush1.bf16.msra.mxu0 0
        %2034 = vmatprep.subr.bf16.mxu0 0
        %2035 = vmatpush1.bf16.msra.mxu0 0
        %2036 = vmatprep.subr.bf16.mxu0 0
        %2037 = vmatpush1.bf16.msra.mxu0 0
        %2038 = vmatprep.subr.bf16.mxu0 0
        %2039 = vmatpush1.bf16.msra.mxu0 0
        %2040 = vmatprep.subr.bf16.mxu0 0
        %2041 = vmatpush1.bf16.msra.mxu0 0
        %2042 = vmatprep.subr.bf16.mxu0 0
        %2043 = vmatpush1.bf16.msra.mxu0 0
        %2044 = vmatprep.subr.bf16.mxu0 0
        %2045 = vmatpush1.bf16.msra.mxu0 0
        %2046 = vmatprep.subr.bf16.mxu0 0
        %2047 = vmatpush1.bf16.msra.mxu0 0
        %2048 = vmatprep.subr.bf16.mxu0 0
        %2049 = vmatpush1.bf16.msra.mxu0 0
        %2050 = vmatprep.subr.bf16.mxu0 0
        %2051 = vmatpush1.bf16.msra.mxu0 0
        %2052 = vmatprep.subr.bf16.mxu0 0
        %2053 = vmatpush1.bf16.msra.mxu0 0
        %2054 = vmatprep.subr.bf16.mxu0 0
        %2055 = vmatpush1.bf16.msra.mxu0 0
        %2056 = vmatprep.subr.bf16.mxu0 0
        %2057 = vmatpush1.bf16.msra.mxu0 0
        %2058 = vmatprep.mubr.bf16.mxu0 0
        %2059 = vmatmul.mubr.bf16.gmra.mrb[0].mxu0 %v2021
        %v2060 = vpop.f32.mrb[0].mxu0
        %v2061 = vadd.f32 %v1993, %v2060
        %v2062 = vpop.f32.mrb[0].mxu0
        %v2063 = vpop.f32.mrb[0].mxu0
        %v2064 = vadd.f32 %v1998, %v2063
        %v2065 = vpop.f32.mrb[0].mxu0
        %2066 = vmatprep.mubr.bf16.mxu0 0
        %2067 = vmatmul.mubr.bf16.gmra.mrb[0].mxu0 %v2024
        %v2068 = vpop.f32.mrb[0].mxu0
        %v2069 = vadd.f32 %v2003, %v2068
        %v2070 = vpop.f32.mrb[0].mxu0
        %v2071 = vpop.f32.mrb[0].mxu0
        %v2072 = vadd.f32 %v2008, %v2071
        %v2073 = vpop.f32.mrb[0].mxu0
        %2074 = vdwg.mxu0
        %v2075 = vadd.f32 %v1642, %v2061
        %v2076 = vadd.f32 %v1643, %v2064
        %v2077 = vadd.f32 %v1644, %v2069
        %v2078 = vadd.f32 %v1645, %v2072
        %v2079 = vmul.f32 %v2075, %v335
        %v2080 = vmul.f32 %v2076, %v335
        %v2081 = vmul.f32 %v2077, %v335
        %v2082 = vmul.f32 %v2078, %v335
        %2083 = vst [vmem:[%s314] sm:$0xff] %v2079
        %2084 = vst [vmem:[%s314 + $0x8] sm:$0xff] %v2080
        %2085 = vst [vmem:[%s314 + $0x10] sm:$0xff] %v2081
        %2086 = vst [vmem:[%s314 + $0x18] sm:$0xff] %v2082
        %s2087 = sand.u32 %s192, 1
        %s2088 = scalar_lea.sflag [#allocation10], %s2087
        %s2089 = sand.u32 %s192, 1
        %s2090 = smul.addr %s2089, 32
        %s2091 = scalar_lea.vmem [#allocation11], %s2090
        // Predicated region
        $region81: #{tpu_custom_call.1} parent=43 // pred_check
          %p2092 = pneg %p202
        $region82: #{tpu_custom_call.1} parent=43 // pred_check_branch
          %2094 = sbr.rel (%p2092) target = $region84
        $region83: #{tpu_custom_call.1} parent=43 // pred_region
          %s2096 = ssub.s32 512, 512
          %2097 = vsyncadd %s2088, %s2096
          %s2098 = smul.addr %s34, 20
          %s2099 = sadd.s32 %s35, %s2098
          %s2100 = smul.addr %s2099, 128
          %s2101 = scalar_lea.hbm %s7, %s2100
          %s2102 = sshll.u32 %s2091, 4
          %s2103 = int_to_ptr.vmem [resolvable:$true] %s2102
          %2108 = dma.vmem_to_hbm [thread:$0]  %s2103, 512, %s2101, %s2088, 128, 640, 8
        $region84: #{tpu_custom_call.1} parent=43 // pred_fallthru
          _
      $region44: #{tpu_custom_call.1} parent=5 // pred_fallthru
        _
      %p2109 = scmp.le.s32.totalorder 2, %s25
      // Predicated region
      $region85: #{tpu_custom_call.1} parent=5 // pred_check
        %p2110 = pneg %p2109
      $region86: #{tpu_custom_call.1} parent=5 // pred_check_branch
        %2112 = sbr.rel (%p2110) target = $region88
      $region87: #{tpu_custom_call.1} parent=5 // pred_region
        %s2113 = ssub.s32 %s25, 2
        // Predicated region
        $region89: #{tpu_custom_call.1} parent=87 // pred_check
          %p2114 = pneg %p208
        $region90: #{tpu_custom_call.1} parent=87 // pred_check_branch
          %2116 = sbr.rel (%p2114) target = $region92
        $region91: #{tpu_custom_call.1} parent=87 // pred_region
          %s2117 = sand.u32 %s193, 1
          %s2118 = scalar_lea.sflag [#allocation10], %s2117
          %s2119 = sand.u32 %s193, 1
          %s2120 = smul.addr %s2119, 32
          %s2121 = scalar_lea.vmem [#allocation11], %s2120
          %2122 = dma.done %s2118, 512
        $region92: #{tpu_custom_call.1} parent=87 // pred_fallthru
          _
      $region88: #{tpu_custom_call.1} parent=5 // pred_fallthru
        _
    $region6: #{tpu_custom_call.1} parent=1 // loop_footer
      %s29 = sadd.s32 1, %s25
    $region7: #{tpu_custom_call.1} parent=1 // loop_footer_branch
      %24 = sbr.rel target = $region3
    $region8: #{tpu_custom_call.1} parent=1 // loop_exit
      _
    %2123 = vsyncpa [#allocation9], 1
    %s2124 = scalar_lea.sflag [#allocation9], 1
    %2125 = vsyncpa %s2124, 1
    %2126 = vsyncpa [#allocation10], 1
    %s2127 = scalar_lea.sflag [#allocation10], 1
    %2128 = vsyncpa %s2127, 1

</llo_original>
